<compile_context>
chip_gen: v7x
topology: tpu7x:2x2x1
jax: 0.10.0
libtpu: 0.0.40
codegen_flags: <defaults>
</compile_context>

<pallas_src>
import functools
import math

import jax
import jax.numpy as jnp
from jax.experimental import pallas as pl
from jax.experimental.pallas import tpu as pltpu

D_MODEL = 32
NUM_HEADS = 4
HEAD_DIM = D_MODEL // NUM_HEADS
D_FF = 64
EPS = 1e-5

# Slab geometry (lane-dense packing of all weights/biases into two f32 buffers).
LANES = 128
W_ROWS = 3 * D_MODEL   # rows: [wvo | (wqk | w1) | w2^T]
V_ROWS = 8             # one packed vector per row


def _layernorm(x, gamma, beta):
    # x: (N, D); gamma/beta: (1, D)
    mean = jnp.mean(x, axis=-1, keepdims=True)
    var = jnp.mean((x - mean) ** 2, axis=-1, keepdims=True)
    return (x - mean) * jax.lax.rsqrt(var + EPS) * gamma + beta


def decoder_layer_kernel(
    x_ref, w_ref, v_ref, o_ref,
    *, batch, seq, num_heads, head_dim, d_model, d_ff,
):
    n = batch * seq
    x = x_ref[...]                                     # (N, D) slab

    # ---- unpack vector slab (kept (1, k) so they broadcast over rows) ----
    bqk = v_ref[0:1, 0:2 * d_model]                    # fused Q|K bias (Q part pre-scaled)
    b1 = v_ref[1:2, 0:d_ff]
    bvo = v_ref[2:3, 0:d_model]                        # bv @ wo + bo
    b2 = v_ref[3:4, 0:d_model]
    g1 = v_ref[4:5, 0:d_model]
    be1 = v_ref[5:6, 0:d_model]
    g2 = v_ref[6:7, 0:d_model]
    be2 = v_ref[7:8, 0:d_model]

    # ---- unpack weight slab (static ref views) ----
    wvo = w_ref[0:d_model, :]                                            # (D, H*D) fused V@O
    wqk = w_ref[d_model:2 * d_model, 0:2 * d_model]                      # (D, 2D) fused Q|K
    w1 = w_ref[d_model:2 * d_model, 2 * d_model:2 * d_model + d_ff]      # (D, F)
    w2t = w_ref[2 * d_model:3 * d_model, 0:d_ff]                         # (D, F) = w2.T

    # ---- norm1 ----
    xn = _layernorm(x, g1, be1)

    # ---- multi-head self-attention ----
    # Two MXU launches for all projections: fused Q|K and fused per-head V@O.
    qk = jnp.dot(xn, wqk, preferred_element_type=jnp.float32) + bqk      # (N, 2D)
    vo = jnp.dot(xn, wvo, preferred_element_type=jnp.float32)            # (N, H*D)

    # Accumulator starts at the folded bias (bv@wo + bo); softmax rows sum to ~1.
    attn = jnp.broadcast_to(bvo, (n, d_model))
    for h in range(num_heads):                         # static unroll, H = 4
        q = qk[:, h * head_dim:(h + 1) * head_dim].reshape(batch, seq, head_dim)
        k = qk[:, d_model + h * head_dim:d_model + (h + 1) * head_dim].reshape(
            batch, seq, head_dim)
        vh = vo[:, h * d_model:(h + 1) * d_model].reshape(batch, seq, d_model)
        # 1/sqrt(head_dim) is already folded into wq/bq host-side.
        s = jnp.einsum("bqd,bkd->bqk", q, k, preferred_element_type=jnp.float32)
        s = s - jnp.max(s, axis=-1, keepdims=True)
        p = jnp.exp(s)
        p = p * pl.reciprocal(jnp.sum(p, axis=-1, keepdims=True), approx=True)
        oh = jnp.einsum("bqk,bkd->bqd", p, vh, preferred_element_type=jnp.float32)
        attn = attn + oh.reshape(n, d_model)

    # residual 1 (dropout = identity)
    x1 = x + attn

    # ---- norm2 + feed-forward ----
    x2n = _layernorm(x1, g2, be2)
    h1 = jnp.dot(x2n, w1, preferred_element_type=jnp.float32) + b1
    h1 = jnp.maximum(h1, 0.0)
    # h1 @ w2 with w2 stored transposed (lane-dense) in the slab: contract last dims.
    ff = jax.lax.dot_general(h1, w2t, (((1,), (1,)), ((), ())),
                             preferred_element_type=jnp.float32) + b2

    # residual 2 (dropout = identity)
    o_ref[...] = (x1 + ff).astype(o_ref.dtype)


def prepare_params(params):
    """One-time host-side repack of the raw parameters into two lane-dense slabs.

    Hoisted out of the per-call forward path per the perf review.
    """
    D, H, hd, F = D_MODEL, NUM_HEADS, HEAD_DIM, D_FF
    assert H * D <= LANES and 2 * D + F <= LANES and F <= LANES
    scale = 1.0 / math.sqrt(hd)

    # Fold 1/sqrt(head_dim) into Q; fuse Q|K into one projection.
    wqk = jnp.concatenate([params["wq"] * scale, params["wk"]], axis=1)      # (D, 2D)
    bqk = jnp.concatenate([params["bq"] * scale, params["bk"]], axis=0)      # (2D,)

    # Fold the output projection into V, per head: wvo[:, h*D:(h+1)*D] = wv_h @ wo_h.
    wv_h = params["wv"].reshape(D, H, hd)                                    # (D, H, hd)
    wo_h = params["wo"].reshape(H, hd, D)                                    # (H, hd, D)
    wvo = jnp.einsum("dhk,hkm->dhm", wv_h, wo_h).reshape(D, H * D)           # (D, H*D)
    bvo = params["bv"] @ params["wo"] + params["bo"]                         # (D,)

    wslab = jnp.zeros((W_ROWS, LANES), jnp.float32)
    wslab = wslab.at[0:D, 0:H * D].set(wvo)
    wslab = wslab.at[D:2 * D, 0:2 * D].set(wqk)
    wslab = wslab.at[D:2 * D, 2 * D:2 * D + F].set(params["w1"])
    wslab = wslab.at[2 * D:3 * D, 0:F].set(params["w2"].T)

    vslab = jnp.zeros((V_ROWS, LANES), jnp.float32)
    vslab = vslab.at[0, 0:2 * D].set(bqk)
    vslab = vslab.at[1, 0:F].set(params["b1"])
    vslab = vslab.at[2, 0:D].set(bvo)
    vslab = vslab.at[3, 0:D].set(params["b2"])
    vslab = vslab.at[4, 0:D].set(params["g1"])
    vslab = vslab.at[5, 0:D].set(params["be1"])
    vslab = vslab.at[6, 0:D].set(params["g2"])
    vslab = vslab.at[7, 0:D].set(params["be2"])
    return wslab, vslab


def decoder_layer_forward(x, wslab, vslab):
    """x: (B, S, D) float32; wslab/vslab from prepare_params(). mask=None path."""
    # TODO(synk): optional additive attention mask not plumbed through (forward default is mask=None).
    B, S, D = x.shape
    x_flat = x.reshape(B * S, D)

    kernel = functools.partial(
        decoder_layer_kernel,
        batch=B, seq=S, num_heads=NUM_HEADS, head_dim=HEAD_DIM,
        d_model=D, d_ff=D_FF,
    )

    out_flat = pl.pallas_call(
        kernel,
        out_shape=jax.ShapeDtypeStruct((B * S, D), x.dtype),
        # No grid: the whole problem (a few KB) lives in VMEM for one kernel invocation,
        # avoiding the single-step pipeline prologue.  If B*S grows to a few hundred rows,
        # reintroduce a row grid marked "parallel" (2 TCs on v7x) and re-derive the VMEM
        # budget against v7x's 64 MiB; the explicit limit below documents today's budget.
        compiler_params=pltpu.CompilerParams(vmem_limit_bytes=16 * 1024 * 1024),
    )(x_flat, wslab, vslab)
    return out_flat.reshape(B, S, D)


def init_params(key):
    ks = jax.random.split(key, 12)

    def lin(k, fan_in, fan_out):
        kw, kb = jax.random.split(k)
        w = jax.random.normal(kw, (fan_in, fan_out), jnp.float32) * 0.05
        b = jax.random.normal(kb, (fan_out,), jnp.float32) * 0.05
        return w, b

    wq, bq = lin(ks[0], D_MODEL, D_MODEL)
    wk, bk = lin(ks[1], D_MODEL, D_MODEL)
    wv, bv = lin(ks[2], D_MODEL, D_MODEL)
    wo, bo = lin(ks[3], D_MODEL, D_MODEL)
    w1, b1 = lin(ks[4], D_MODEL, D_FF)
    w2, b2 = lin(ks[5], D_FF, D_MODEL)
    # LayerNorm affine params (torch default init: gamma=1, beta=0); perturb slightly
    # but deterministically so the test is non-trivial.
    g1 = 1.0 + 0.1 * jax.random.normal(ks[6], (D_MODEL,), jnp.float32)
    be1 = 0.1 * jax.random.normal(ks[7], (D_MODEL,), jnp.float32)
    g2 = 1.0 + 0.1 * jax.random.normal(ks[8], (D_MODEL,), jnp.float32)
    be2 = 0.1 * jax.random.normal(ks[9], (D_MODEL,), jnp.float32)
    return dict(wq=wq, bq=bq, wk=wk, bk=bk, wv=wv, bv=bv, wo=wo, bo=bo,
                g1=g1, be1=be1, g2=g2, be2=be2, w1=w1, b1=b1, w2=w2, b2=b2)


def reference_forward(x, p):
    """Pure-JAX mirror of the PyTorch DecoderLayer.forward (mask=None, eval dropout)."""
    def ln(x, g, b):
        m = jnp.mean(x, axis=-1, keepdims=True)
        v = jnp.mean((x - m) ** 2, axis=-1, keepdims=True)
        return (x - m) / jnp.sqrt(v + EPS) * g + b

    B, S, D = x.shape
    xn = ln(x, p["g1"], p["be1"])
    q = xn @ p["wq"] + p["bq"]
    k = xn @ p["wk"] + p["bk"]
    v = xn @ p["wv"] + p["bv"]
    q = q.reshape(B, S, NUM_HEADS, HEAD_DIM).transpose(0, 2, 1, 3)
    k = k.reshape(B, S, NUM_HEADS, HEAD_DIM).transpose(0, 2, 1, 3)
    v = v.reshape(B, S, NUM_HEADS, HEAD_DIM).transpose(0, 2, 1, 3)
    s = jnp.einsum("bhqd,bhkd->bhqk", q, k) / jnp.sqrt(jnp.float32(HEAD_DIM))
    pbs = jax.nn.softmax(s, axis=-1)
    a = jnp.einsum("bhqk,bhkd->bhqd", pbs, v)
    a = a.transpose(0, 2, 1, 3).reshape(B, S, D)
    attn = a @ p["wo"] + p["bo"]
    x1 = x + attn
    x2n = ln(x1, p["g2"], p["be2"])
    ff = jnp.maximum(x2n @ p["w1"] + p["b1"], 0.0) @ p["w2"] + p["b2"]
    return x1 + ff


if __name__ == "__main__":
    B, S = 2, 8
    key = jax.random.PRNGKey(0)
    kx, kp = jax.random.split(key)
    x = jax.random.normal(kx, (B, S, D_MODEL), jnp.float32)
    params = init_params(kp)

    # One-time weight repack (fold scale/wo, fuse QK, pack slabs) — amortized across calls.
    wslab, vslab = prepare_params(params)
    wslab, vslab = jax.block_until_ready((wslab, vslab))

    out = decoder_layer_forward(x, wslab, vslab)
    out = jax.block_until_ready(out)

    ref = reference_forward(x, params)
    assert out.shape == (B, S, D_MODEL)
    # Tolerance loosened vs. bit-exact: softmax denominator uses the approximate EUP
    # reciprocal, and the folded bv@wo bias assumes softmax rows sum to exactly 1.
    assert jnp.allclose(out, ref, atol=2e-3, rtol=2e-3), "mismatch vs pure-JAX reference"

    print("KERNEL_OK")
</pallas_src>

<mosaic_0001>
module attributes {stable_mosaic.version = 11 : i64} {
  func.func @decoder_layer_kernel(%arg0: memref<16x32xf32, #tpu.memory_space<vmem>>, %arg1: memref<96x128xf32, #tpu.memory_space<vmem>>, %arg2: memref<8x128xf32, #tpu.memory_space<vmem>>, %arg3: memref<16x32xf32, #tpu.memory_space<vmem>>) attributes {dimension_semantics = [], scalar_prefetch = 0 : i64, scratch_operands = 0 : i64, tpu.core_type = #tpu.core_type<tc>} {
    %c0 = arith.constant 0 : index
    %c0_0 = arith.constant 0 : index
    %0 = vector.load %arg0[%c0, %c0_0] : memref<16x32xf32, #tpu.memory_space<vmem>>, vector<16x32xf32>
    %c0_1 = arith.constant 0 : index
    %c0_2 = arith.constant 0 : index
    %1 = vector.load %arg2[%c0_1, %c0_2] : memref<8x128xf32, #tpu.memory_space<vmem>>, vector<1x64xf32>
    %c1 = arith.constant 1 : index
    %c0_3 = arith.constant 0 : index
    %2 = vector.load %arg2[%c1, %c0_3] : memref<8x128xf32, #tpu.memory_space<vmem>>, vector<1x64xf32>
    %c2 = arith.constant 2 : index
    %c0_4 = arith.constant 0 : index
    %3 = vector.load %arg2[%c2, %c0_4] : memref<8x128xf32, #tpu.memory_space<vmem>>, vector<1x32xf32>
    %c3 = arith.constant 3 : index
    %c0_5 = arith.constant 0 : index
    %4 = vector.load %arg2[%c3, %c0_5] : memref<8x128xf32, #tpu.memory_space<vmem>>, vector<1x32xf32>
    %c4 = arith.constant 4 : index
    %c0_6 = arith.constant 0 : index
    %5 = vector.load %arg2[%c4, %c0_6] : memref<8x128xf32, #tpu.memory_space<vmem>>, vector<1x32xf32>
    %c5 = arith.constant 5 : index
    %c0_7 = arith.constant 0 : index
    %6 = vector.load %arg2[%c5, %c0_7] : memref<8x128xf32, #tpu.memory_space<vmem>>, vector<1x32xf32>
    %c6 = arith.constant 6 : index
    %c0_8 = arith.constant 0 : index
    %7 = vector.load %arg2[%c6, %c0_8] : memref<8x128xf32, #tpu.memory_space<vmem>>, vector<1x32xf32>
    %c7 = arith.constant 7 : index
    %c0_9 = arith.constant 0 : index
    %8 = vector.load %arg2[%c7, %c0_9] : memref<8x128xf32, #tpu.memory_space<vmem>>, vector<1x32xf32>
    %c0_10 = arith.constant 0 : index
    %c0_11 = arith.constant 0 : index
    %9 = vector.load %arg1[%c0_10, %c0_11] : memref<96x128xf32, #tpu.memory_space<vmem>>, vector<32x128xf32>
    %c32 = arith.constant 32 : index
    %c0_12 = arith.constant 0 : index
    %10 = vector.load %arg1[%c32, %c0_12] : memref<96x128xf32, #tpu.memory_space<vmem>>, vector<32x64xf32>
    %c32_13 = arith.constant 32 : index
    %c64 = arith.constant 64 : index
    %11 = vector.load %arg1[%c32_13, %c64] : memref<96x128xf32, #tpu.memory_space<vmem>>, vector<32x64xf32>
    %c64_14 = arith.constant 64 : index
    %c0_15 = arith.constant 0 : index
    %12 = vector.load %arg1[%c64_14, %c0_15] : memref<96x128xf32, #tpu.memory_space<vmem>>, vector<32x64xf32>
    %cst = arith.constant dense<0.000000e+00> : vector<16xf32>
    %13 = vector.multi_reduction <add>, %0, %cst [1] : vector<16x32xf32> to vector<16xf32>
    %14 = vector.shape_cast %13 : vector<16xf32> to vector<16x1xf32>
    %cst_16 = arith.constant 3.200000e+01 : f32
    %15 = vector.broadcast %cst_16 : f32 to vector<16x1xf32>
    %16 = arith.divf %14, %15 : vector<16x1xf32>
    %17 = vector.broadcast %16 : vector<16x1xf32> to vector<16x32xf32>
    %18 = arith.subf %0, %17 : vector<16x32xf32>
    %19 = arith.mulf %18, %18 : vector<16x32xf32>
    %cst_17 = arith.constant dense<0.000000e+00> : vector<16xf32>
    %20 = vector.multi_reduction <add>, %19, %cst_17 [1] : vector<16x32xf32> to vector<16xf32>
    %21 = vector.shape_cast %20 : vector<16xf32> to vector<16x1xf32>
    %cst_18 = arith.constant 3.200000e+01 : f32
    %22 = vector.broadcast %cst_18 : f32 to vector<16x1xf32>
    %23 = arith.divf %21, %22 : vector<16x1xf32>
    %24 = vector.broadcast %16 : vector<16x1xf32> to vector<16x32xf32>
    %25 = arith.subf %0, %24 : vector<16x32xf32>
    %cst_19 = arith.constant 9.99999974E-6 : f32
    %26 = vector.broadcast %cst_19 : f32 to vector<16x1xf32>
    %27 = arith.addf %23, %26 : vector<16x1xf32>
    %28 = math.rsqrt %27 : vector<16x1xf32>
    %29 = vector.broadcast %28 : vector<16x1xf32> to vector<16x32xf32>
    %30 = arith.mulf %25, %29 : vector<16x32xf32>
    %31 = vector.broadcast %5 : vector<1x32xf32> to vector<16x32xf32>
    %32 = arith.mulf %30, %31 : vector<16x32xf32>
    %33 = vector.broadcast %6 : vector<1x32xf32> to vector<16x32xf32>
    %34 = arith.addf %32, %33 : vector<16x32xf32>
    %cst_20 = arith.constant dense<0.000000e+00> : vector<16x64xf32>
    %35 = tpu.matmul %34, %10, %cst_20 {dimension_numbers = #tpu.dot_dimension_numbers<[1], [0], [0], [1], [0, 0, 1, 1], [], []>} : vector<16x32xf32>, vector<32x64xf32>, vector<16x64xf32> -> vector<16x64xf32>
    %36 = vector.broadcast %1 : vector<1x64xf32> to vector<16x64xf32>
    %37 = arith.addf %35, %36 : vector<16x64xf32>
    %cst_21 = arith.constant dense<0.000000e+00> : vector<16x128xf32>
    %38 = tpu.matmul %34, %9, %cst_21 {dimension_numbers = #tpu.dot_dimension_numbers<[1], [0], [0], [1], [0, 0, 1, 1], [], []>} : vector<16x32xf32>, vector<32x128xf32>, vector<16x128xf32> -> vector<16x128xf32>
    %39 = vector.shape_cast %3 : vector<1x32xf32> to vector<1x32xf32>
    %40 = vector.broadcast %39 : vector<1x32xf32> to vector<16x32xf32>
    %41 = vector.extract_strided_slice %37 {offsets = [0, 0], sizes = [16, 8], strides = [1, 1]} : vector<16x64xf32> to vector<16x8xf32>
    %42 = vector.shape_cast %41 : vector<16x8xf32> to vector<2x8x8xf32>
    %43 = vector.extract_strided_slice %37 {offsets = [0, 32], sizes = [16, 8], strides = [1, 1]} : vector<16x64xf32> to vector<16x8xf32>
    %44 = vector.shape_cast %43 : vector<16x8xf32> to vector<2x8x8xf32>
    %45 = vector.extract_strided_slice %38 {offsets = [0, 0], sizes = [16, 32], strides = [1, 1]} : vector<16x128xf32> to vector<16x32xf32>
    %46 = vector.shape_cast %45 : vector<16x32xf32> to vector<2x8x32xf32>
    "tpu.trace_start"() <{level = 10 : i32, message = "bqd,bkd->bqk"}> : () -> ()
    %cst_22 = arith.constant dense<0.000000e+00> : vector<2x8x8xf32>
    %47 = tpu.matmul %42, %44, %cst_22 {dimension_numbers = #tpu.dot_dimension_numbers<[2], [2], [1], [1], [0, 0, 0, 1, 1, 1], [0], [0]>} : vector<2x8x8xf32>, vector<2x8x8xf32>, vector<2x8x8xf32> -> vector<2x8x8xf32>
    "tpu.trace_stop"() : () -> ()
    %cst_23 = arith.constant dense<0xFF800000> : vector<2x8xf32>
    %48 = vector.multi_reduction <maximumf>, %47, %cst_23 [2] : vector<2x8x8xf32> to vector<2x8xf32>
    %49 = vector.shape_cast %48 : vector<2x8xf32> to vector<2x8x1xf32>
    %50 = vector.broadcast %49 : vector<2x8x1xf32> to vector<2x8x8xf32>
    %51 = arith.subf %47, %50 : vector<2x8x8xf32>
    %52 = math.exp %51 : vector<2x8x8xf32>
    %cst_24 = arith.constant dense<0.000000e+00> : vector<2x8xf32>
    %53 = vector.multi_reduction <add>, %52, %cst_24 [2] : vector<2x8x8xf32> to vector<2x8xf32>
    %54 = vector.shape_cast %53 : vector<2x8xf32> to vector<2x8x1xf32>
    %55 = tpu.reciprocal %54 {approx = true} : vector<2x8x1xf32> -> vector<2x8x1xf32>
    %56 = vector.broadcast %55 : vector<2x8x1xf32> to vector<2x8x8xf32>
    %57 = arith.mulf %52, %56 : vector<2x8x8xf32>
    "tpu.trace_start"() <{level = 10 : i32, message = "bqk,bkd->bqd"}> : () -> ()
    %cst_25 = arith.constant dense<0.000000e+00> : vector<2x8x32xf32>
    %58 = tpu.matmul %57, %46, %cst_25 {dimension_numbers = #tpu.dot_dimension_numbers<[2], [1], [1], [2], [0, 0, 0, 1, 1, 2], [0], [0]>} : vector<2x8x8xf32>, vector<2x8x32xf32>, vector<2x8x32xf32> -> vector<2x8x32xf32>
    "tpu.trace_stop"() : () -> ()
    %59 = vector.shape_cast %58 : vector<2x8x32xf32> to vector<16x32xf32>
    %60 = arith.addf %40, %59 : vector<16x32xf32>
    %61 = vector.extract_strided_slice %37 {offsets = [0, 8], sizes = [16, 8], strides = [1, 1]} : vector<16x64xf32> to vector<16x8xf32>
    %62 = vector.shape_cast %61 : vector<16x8xf32> to vector<2x8x8xf32>
    %63 = vector.extract_strided_slice %37 {offsets = [0, 40], sizes = [16, 8], strides = [1, 1]} : vector<16x64xf32> to vector<16x8xf32>
    %64 = vector.shape_cast %63 : vector<16x8xf32> to vector<2x8x8xf32>
    %65 = vector.extract_strided_slice %38 {offsets = [0, 32], sizes = [16, 32], strides = [1, 1]} : vector<16x128xf32> to vector<16x32xf32>
    %66 = vector.shape_cast %65 : vector<16x32xf32> to vector<2x8x32xf32>
    "tpu.trace_start"() <{level = 10 : i32, message = "bqd,bkd->bqk"}> : () -> ()
    %cst_26 = arith.constant dense<0.000000e+00> : vector<2x8x8xf32>
    %67 = tpu.matmul %62, %64, %cst_26 {dimension_numbers = #tpu.dot_dimension_numbers<[2], [2], [1], [1], [0, 0, 0, 1, 1, 1], [0], [0]>} : vector<2x8x8xf32>, vector<2x8x8xf32>, vector<2x8x8xf32> -> vector<2x8x8xf32>
    "tpu.trace_stop"() : () -> ()
    %cst_27 = arith.constant dense<0xFF800000> : vector<2x8xf32>
    %68 = vector.multi_reduction <maximumf>, %67, %cst_27 [2] : vector<2x8x8xf32> to vector<2x8xf32>
    %69 = vector.shape_cast %68 : vector<2x8xf32> to vector<2x8x1xf32>
    %70 = vector.broadcast %69 : vector<2x8x1xf32> to vector<2x8x8xf32>
    %71 = arith.subf %67, %70 : vector<2x8x8xf32>
    %72 = math.exp %71 : vector<2x8x8xf32>
    %cst_28 = arith.constant dense<0.000000e+00> : vector<2x8xf32>
    %73 = vector.multi_reduction <add>, %72, %cst_28 [2] : vector<2x8x8xf32> to vector<2x8xf32>
    %74 = vector.shape_cast %73 : vector<2x8xf32> to vector<2x8x1xf32>
    %75 = tpu.reciprocal %74 {approx = true} : vector<2x8x1xf32> -> vector<2x8x1xf32>
    %76 = vector.broadcast %75 : vector<2x8x1xf32> to vector<2x8x8xf32>
    %77 = arith.mulf %72, %76 : vector<2x8x8xf32>
    "tpu.trace_start"() <{level = 10 : i32, message = "bqk,bkd->bqd"}> : () -> ()
    %cst_29 = arith.constant dense<0.000000e+00> : vector<2x8x32xf32>
    %78 = tpu.matmul %77, %66, %cst_29 {dimension_numbers = #tpu.dot_dimension_numbers<[2], [1], [1], [2], [0, 0, 0, 1, 1, 2], [0], [0]>} : vector<2x8x8xf32>, vector<2x8x32xf32>, vector<2x8x32xf32> -> vector<2x8x32xf32>
    "tpu.trace_stop"() : () -> ()
    %79 = vector.shape_cast %78 : vector<2x8x32xf32> to vector<16x32xf32>
    %80 = arith.addf %60, %79 : vector<16x32xf32>
    %81 = vector.extract_strided_slice %37 {offsets = [0, 16], sizes = [16, 8], strides = [1, 1]} : vector<16x64xf32> to vector<16x8xf32>
    %82 = vector.shape_cast %81 : vector<16x8xf32> to vector<2x8x8xf32>
    %83 = vector.extract_strided_slice %37 {offsets = [0, 48], sizes = [16, 8], strides = [1, 1]} : vector<16x64xf32> to vector<16x8xf32>
    %84 = vector.shape_cast %83 : vector<16x8xf32> to vector<2x8x8xf32>
    %85 = vector.extract_strided_slice %38 {offsets = [0, 64], sizes = [16, 32], strides = [1, 1]} : vector<16x128xf32> to vector<16x32xf32>
    %86 = vector.shape_cast %85 : vector<16x32xf32> to vector<2x8x32xf32>
    "tpu.trace_start"() <{level = 10 : i32, message = "bqd,bkd->bqk"}> : () -> ()
    %cst_30 = arith.constant dense<0.000000e+00> : vector<2x8x8xf32>
    %87 = tpu.matmul %82, %84, %cst_30 {dimension_numbers = #tpu.dot_dimension_numbers<[2], [2], [1], [1], [0, 0, 0, 1, 1, 1], [0], [0]>} : vector<2x8x8xf32>, vector<2x8x8xf32>, vector<2x8x8xf32> -> vector<2x8x8xf32>
    "tpu.trace_stop"() : () -> ()
    %cst_31 = arith.constant dense<0xFF800000> : vector<2x8xf32>
    %88 = vector.multi_reduction <maximumf>, %87, %cst_31 [2] : vector<2x8x8xf32> to vector<2x8xf32>
    %89 = vector.shape_cast %88 : vector<2x8xf32> to vector<2x8x1xf32>
    %90 = vector.broadcast %89 : vector<2x8x1xf32> to vector<2x8x8xf32>
    %91 = arith.subf %87, %90 : vector<2x8x8xf32>
    %92 = math.exp %91 : vector<2x8x8xf32>
    %cst_32 = arith.constant dense<0.000000e+00> : vector<2x8xf32>
    %93 = vector.multi_reduction <add>, %92, %cst_32 [2] : vector<2x8x8xf32> to vector<2x8xf32>
    %94 = vector.shape_cast %93 : vector<2x8xf32> to vector<2x8x1xf32>
    %95 = tpu.reciprocal %94 {approx = true} : vector<2x8x1xf32> -> vector<2x8x1xf32>
    %96 = vector.broadcast %95 : vector<2x8x1xf32> to vector<2x8x8xf32>
    %97 = arith.mulf %92, %96 : vector<2x8x8xf32>
    "tpu.trace_start"() <{level = 10 : i32, message = "bqk,bkd->bqd"}> : () -> ()
    %cst_33 = arith.constant dense<0.000000e+00> : vector<2x8x32xf32>
    %98 = tpu.matmul %97, %86, %cst_33 {dimension_numbers = #tpu.dot_dimension_numbers<[2], [1], [1], [2], [0, 0, 0, 1, 1, 2], [0], [0]>} : vector<2x8x8xf32>, vector<2x8x32xf32>, vector<2x8x32xf32> -> vector<2x8x32xf32>
    "tpu.trace_stop"() : () -> ()
    %99 = vector.shape_cast %98 : vector<2x8x32xf32> to vector<16x32xf32>
    %100 = arith.addf %80, %99 : vector<16x32xf32>
    %101 = vector.extract_strided_slice %37 {offsets = [0, 24], sizes = [16, 8], strides = [1, 1]} : vector<16x64xf32> to vector<16x8xf32>
    %102 = vector.shape_cast %101 : vector<16x8xf32> to vector<2x8x8xf32>
    %103 = vector.extract_strided_slice %37 {offsets = [0, 56], sizes = [16, 8], strides = [1, 1]} : vector<16x64xf32> to vector<16x8xf32>
    %104 = vector.shape_cast %103 : vector<16x8xf32> to vector<2x8x8xf32>
    %105 = vector.extract_strided_slice %38 {offsets = [0, 96], sizes = [16, 32], strides = [1, 1]} : vector<16x128xf32> to vector<16x32xf32>
    %106 = vector.shape_cast %105 : vector<16x32xf32> to vector<2x8x32xf32>
    "tpu.trace_start"() <{level = 10 : i32, message = "bqd,bkd->bqk"}> : () -> ()
    %cst_34 = arith.constant dense<0.000000e+00> : vector<2x8x8xf32>
    %107 = tpu.matmul %102, %104, %cst_34 {dimension_numbers = #tpu.dot_dimension_numbers<[2], [2], [1], [1], [0, 0, 0, 1, 1, 1], [0], [0]>} : vector<2x8x8xf32>, vector<2x8x8xf32>, vector<2x8x8xf32> -> vector<2x8x8xf32>
    "tpu.trace_stop"() : () -> ()
    %cst_35 = arith.constant dense<0xFF800000> : vector<2x8xf32>
    %108 = vector.multi_reduction <maximumf>, %107, %cst_35 [2] : vector<2x8x8xf32> to vector<2x8xf32>
    %109 = vector.shape_cast %108 : vector<2x8xf32> to vector<2x8x1xf32>
    %110 = vector.broadcast %109 : vector<2x8x1xf32> to vector<2x8x8xf32>
    %111 = arith.subf %107, %110 : vector<2x8x8xf32>
    %112 = math.exp %111 : vector<2x8x8xf32>
    %cst_36 = arith.constant dense<0.000000e+00> : vector<2x8xf32>
    %113 = vector.multi_reduction <add>, %112, %cst_36 [2] : vector<2x8x8xf32> to vector<2x8xf32>
    %114 = vector.shape_cast %113 : vector<2x8xf32> to vector<2x8x1xf32>
    %115 = tpu.reciprocal %114 {approx = true} : vector<2x8x1xf32> -> vector<2x8x1xf32>
    %116 = vector.broadcast %115 : vector<2x8x1xf32> to vector<2x8x8xf32>
    %117 = arith.mulf %112, %116 : vector<2x8x8xf32>
    "tpu.trace_start"() <{level = 10 : i32, message = "bqk,bkd->bqd"}> : () -> ()
    %cst_37 = arith.constant dense<0.000000e+00> : vector<2x8x32xf32>
    %118 = tpu.matmul %117, %106, %cst_37 {dimension_numbers = #tpu.dot_dimension_numbers<[2], [1], [1], [2], [0, 0, 0, 1, 1, 2], [0], [0]>} : vector<2x8x8xf32>, vector<2x8x32xf32>, vector<2x8x32xf32> -> vector<2x8x32xf32>
    "tpu.trace_stop"() : () -> ()
    %119 = vector.shape_cast %118 : vector<2x8x32xf32> to vector<16x32xf32>
    %120 = arith.addf %100, %119 : vector<16x32xf32>
    %121 = arith.addf %0, %120 : vector<16x32xf32>
    %cst_38 = arith.constant dense<0.000000e+00> : vector<16xf32>
    %122 = vector.multi_reduction <add>, %121, %cst_38 [1] : vector<16x32xf32> to vector<16xf32>
    %123 = vector.shape_cast %122 : vector<16xf32> to vector<16x1xf32>
    %cst_39 = arith.constant 3.200000e+01 : f32
    %124 = vector.broadcast %cst_39 : f32 to vector<16x1xf32>
    %125 = arith.divf %123, %124 : vector<16x1xf32>
    %126 = vector.broadcast %125 : vector<16x1xf32> to vector<16x32xf32>
    %127 = arith.subf %121, %126 : vector<16x32xf32>
    %128 = arith.mulf %127, %127 : vector<16x32xf32>
    %cst_40 = arith.constant dense<0.000000e+00> : vector<16xf32>
    %129 = vector.multi_reduction <add>, %128, %cst_40 [1] : vector<16x32xf32> to vector<16xf32>
    %130 = vector.shape_cast %129 : vector<16xf32> to vector<16x1xf32>
    %cst_41 = arith.constant 3.200000e+01 : f32
    %131 = vector.broadcast %cst_41 : f32 to vector<16x1xf32>
    %132 = arith.divf %130, %131 : vector<16x1xf32>
    %133 = vector.broadcast %125 : vector<16x1xf32> to vector<16x32xf32>
    %134 = arith.subf %121, %133 : vector<16x32xf32>
    %cst_42 = arith.constant 9.99999974E-6 : f32
    %135 = vector.broadcast %cst_42 : f32 to vector<16x1xf32>
    %136 = arith.addf %132, %135 : vector<16x1xf32>
    %137 = math.rsqrt %136 : vector<16x1xf32>
    %138 = vector.broadcast %137 : vector<16x1xf32> to vector<16x32xf32>
    %139 = arith.mulf %134, %138 : vector<16x32xf32>
    %140 = vector.broadcast %7 : vector<1x32xf32> to vector<16x32xf32>
    %141 = arith.mulf %139, %140 : vector<16x32xf32>
    %142 = vector.broadcast %8 : vector<1x32xf32> to vector<16x32xf32>
    %143 = arith.addf %141, %142 : vector<16x32xf32>
    %cst_43 = arith.constant dense<0.000000e+00> : vector<16x64xf32>
    %144 = tpu.matmul %143, %11, %cst_43 {dimension_numbers = #tpu.dot_dimension_numbers<[1], [0], [0], [1], [0, 0, 1, 1], [], []>} : vector<16x32xf32>, vector<32x64xf32>, vector<16x64xf32> -> vector<16x64xf32>
    %145 = vector.broadcast %2 : vector<1x64xf32> to vector<16x64xf32>
    %146 = arith.addf %144, %145 : vector<16x64xf32>
    %cst_44 = arith.constant 0.000000e+00 : f32
    %147 = vector.broadcast %cst_44 : f32 to vector<16x64xf32>
    %148 = arith.maximumf %146, %147 : vector<16x64xf32>
    %cst_45 = arith.constant dense<0.000000e+00> : vector<16x32xf32>
    %149 = tpu.matmul %148, %12, %cst_45 {dimension_numbers = #tpu.dot_dimension_numbers<[1], [1], [0], [0], [0, 0, 1, 0], [], []>} : vector<16x64xf32>, vector<32x64xf32>, vector<16x32xf32> -> vector<16x32xf32>
    %150 = vector.broadcast %4 : vector<1x32xf32> to vector<16x32xf32>
    %151 = arith.addf %149, %150 : vector<16x32xf32>
    %152 = arith.addf %121, %151 : vector<16x32xf32>
    %c0_46 = arith.constant 0 : index
    %c0_47 = arith.constant 0 : index
    %153 = vector.load %arg3[%c0_46, %c0_47] : memref<16x32xf32, #tpu.memory_space<vmem>>, vector<16x32xf32>
    tpu.vector_store %arg3[%c0_46, %c0_47], %152 {strides = array<i32>} : memref<16x32xf32, #tpu.memory_space<vmem>>, vector<16x32xf32>,
    return
  }
}

</mosaic_0001>

<llo_original>
// kernel: tpu_custom_call.1
$region0: #{tpu_custom_call.1}
  #allocation0 [shape = 'u32[]', space=smem, size = 0x4, offset = 0x4, fixed_abs, tag = 'smem constant byte address 0x4 - core index']
  #allocation1 [shape = 'u32[144,128]{1,0:T(1,128)}', space=vmem, size = 0x12000, scoped, tag = 'internal scratch']
  %s0 = inlined_call_operand.hbm [shape: f32[16,32], index: 0, kind: input, shape index: {}]
  %s1 = inlined_call_operand.hbm [shape: f32[96,128], index: 1, kind: input, shape index: {}]
  %s2 = inlined_call_operand.hbm [shape: f32[8,128], index: 2, kind: input, shape index: {}]
  %s3 = inlined_call_operand.hbm [shape: f32[16,32], index: 3, kind: output, shape index: {}]
  %s4 = sld [smem:[#allocation0]]
  $region34: #{tpu_custom_call.1} parent=0
    _
  %s6 = ssub.s32 1, %s4
  %s7 = scalar_select 0, %s6, %s4
  $region1: #{tpu_custom_call.1} parent=0
    #allocation2 [shape = 'u8[8192]{0}', space=vmem, size = 0x2000, scoped, tag = 'input window, operand 0, single buffered']
    #allocation3 [shape = 's32[1]{0}', space=sflag, size = 0x4, scoped, tag = 'scoped memory for tpu_custom_call.1']
    #allocation4 [shape = 's32[1]{0}', space=sflag, size = 0x4, scoped, tag = 'scoped memory for tpu_custom_call.1']
    #allocation5 [shape = 'u8[49152]{0}', space=vmem, size = 0xc000, scoped, tag = 'input window, operand 1, single buffered']
    #allocation6 [shape = 's32[1]{0}', space=sflag, size = 0x4, scoped, tag = 'scoped memory for tpu_custom_call.1']
    #allocation7 [shape = 'u8[4096]{0}', space=vmem, size = 0x1000, scoped, tag = 'input window, operand 2, single buffered']
    #allocation8 [shape = 'u8[8192]{0}', space=vmem, size = 0x2000, scoped, tag = 'output window, operand 0, single buffered']
    %8 = vsyncpa [#allocation3], 0
    %9 = vsyncpa [#allocation6], 0
    %10 = vsyncpa [#allocation4], 0
    // Predicated region
    $region2: #{tpu_custom_call.1} parent=1 // pred_check
      _
    $region3: #{tpu_custom_call.1} parent=1 // pred_check_branch
      %12 = sbr.rel (0) target = $region5
    $region4: #{tpu_custom_call.1} parent=1 // pred_region
      %s14 = ssub.s32 256, 256
      %15 = vsyncadd [#allocation3], %s14
      %s16 = sshll.u32 [#allocation2], 4
      %s17 = int_to_ptr.vmem [resolvable:$true] %s16
      %22 = dma.hbm_to_vmem [thread:$0]  %s0, 256, %s17, [#allocation3], 128, 128, 8
    $region5: #{tpu_custom_call.1} parent=1 // pred_fallthru
      _
    // Predicated region
    $region6: #{tpu_custom_call.1} parent=1 // pred_check
      _
    $region7: #{tpu_custom_call.1} parent=1 // pred_check_branch
      %24 = sbr.rel (0) target = $region9
    $region8: #{tpu_custom_call.1} parent=1 // pred_region
      %s26 = ssub.s32 1536, 1536
      %27 = vsyncadd [#allocation6], %s26
      %s28 = sshll.u32 [#allocation5], 4
      %s29 = int_to_ptr.vmem [resolvable:$true] %s28
      %34 = dma.hbm_to_vmem [thread:$0]  %s1, 1536, %s29, [#allocation6], 128, 128, 8
    $region9: #{tpu_custom_call.1} parent=1 // pred_fallthru
      _
    // Predicated region
    $region10: #{tpu_custom_call.1} parent=1 // pred_check
      _
    $region11: #{tpu_custom_call.1} parent=1 // pred_check_branch
      %36 = sbr.rel (0) target = $region13
    $region12: #{tpu_custom_call.1} parent=1 // pred_region
      %s38 = ssub.s32 128, 128
      %39 = vsyncadd [#allocation6], %s38
      %s41 = sshll.u32 [#allocation7], 4
      %s42 = int_to_ptr.vmem [resolvable:$true] %s41
      %44 = dma.hbm_to_vmem [thread:$0]  %s2, 128, %s42, [#allocation6]
    $region13: #{tpu_custom_call.1} parent=1 // pred_fallthru
      _
    // Predicated region
    $region14: #{tpu_custom_call.1} parent=1 // pred_check
      _
    $region15: #{tpu_custom_call.1} parent=1 // pred_check_branch
      %46 = sbr.rel (0) target = $region17
    $region16: #{tpu_custom_call.1} parent=1 // pred_region
      %47 = dma.done [#allocation3], 256
    $region17: #{tpu_custom_call.1} parent=1 // pred_fallthru
      _
    // Predicated region
    $region18: #{tpu_custom_call.1} parent=1 // pred_check
      _
    $region19: #{tpu_custom_call.1} parent=1 // pred_check_branch
      %49 = sbr.rel (0) target = $region21
    $region20: #{tpu_custom_call.1} parent=1 // pred_region
      %50 = dma.done [#allocation6], 1536
    $region21: #{tpu_custom_call.1} parent=1 // pred_fallthru
      _
    // Predicated region
    $region22: #{tpu_custom_call.1} parent=1 // pred_check
      _
    $region23: #{tpu_custom_call.1} parent=1 // pred_check_branch
      %52 = sbr.rel (0) target = $region25
    $region24: #{tpu_custom_call.1} parent=1 // pred_region
      %53 = dma.done [#allocation6], 128
    $region25: #{tpu_custom_call.1} parent=1 // pred_fallthru
      _
    %v54 = vld [vmem:[#allocation2] sm:$0xff]
    %v55 = vld [vmem:[#allocation2 + $0x8] sm:$0xff]
    %v56 = vld [vmem:[#allocation7] sm:$0x1]
    %v57 = vld [vmem:[#allocation7 + $0x1] sm:$0x1]
    %v58 = vld [vmem:[#allocation7 + $0x2] sm:$0x1]
    %v59 = vld [vmem:[#allocation7 + $0x3] sm:$0x1]
    %v60 = vld [vmem:[#allocation7 + $0x4] sm:$0x1]
    %v61 = vld [vmem:[#allocation7 + $0x5] sm:$0x1]
    %v62 = vld [vmem:[#allocation7 + $0x6] sm:$0x1]
    %v63 = vld [vmem:[#allocation7 + $0x7] sm:$0x1]
    %v64 = vld [vmem:[#allocation5] sm:$0xff]
    %v65 = vld [vmem:[#allocation5 + $0x8] sm:$0xff]
    %v66 = vld [vmem:[#allocation5 + $0x10] sm:$0xff]
    %v67 = vld [vmem:[#allocation5 + $0x18] sm:$0xff]
    %v68 = vld [vmem:[#allocation5 + $0x20] sm:$0xff]
    %v69 = vld [vmem:[#allocation5 + $0x28] sm:$0xff]
    %v70 = vld [vmem:[#allocation5 + $0x30] sm:$0xff]
    %v71 = vld [vmem:[#allocation5 + $0x38] sm:$0xff]
    %v72 = vld [vmem:[#allocation5 + $0x40] sm:$0xff]
    %v73 = vld [vmem:[#allocation5 + $0x48] sm:$0xff]
    %v74 = vld [vmem:[#allocation5 + $0x50] sm:$0xff]
    %v75 = vld [vmem:[#allocation5 + $0x58] sm:$0xff]
    %vm76 = vcmask 261120
    %v77 = vsel %vm76, %v54, 0.0
    %78 = vadd.xlane.f32.xlu0 %v77
    %v79 = vpop.xlane.xlu0 %78
    %v80 = vsel %vm76, %v55, 0.0
    %81 = vadd.xlane.f32.xlu0 %v80
    %v82 = vpop.xlane.xlu0 %81
    %v83 = vrcp.pop 32.0
    %v84 = vmul.f32 %v79, %v83
    %v85 = vmul.f32 %v82, %v83
    %v86 = vsub.f32 %v54, %v84
    %v87 = vsub.f32 %v55, %v85
    %v88 = vmul.f32 %v86, %v86
    %v89 = vmul.f32 %v87, %v87
    %v90 = vsel %vm76, %v88, 0.0
    %91 = vadd.xlane.f32.xlu0 %v90
    %v92 = vpop.xlane.xlu0 %91
    %v93 = vsel %vm76, %v89, 0.0
    %94 = vadd.xlane.f32.xlu0 %v93
    %v95 = vpop.xlane.xlu0 %94
    %v96 = vmul.f32 %v92, %v83
    %v97 = vmul.f32 %v95, %v83
    %v98 = vadd.f32 %v96, 1e-05
    %v99 = vadd.f32 %v97, 1e-05
    %v100 = vrsqrt.pop %v98
    %v101 = vrsqrt.pop %v99
    %v102 = vmul.f32 %v86, %v100
    %v103 = vmul.f32 %v87, %v101
    %v104 = vlaneseq
    %v105 = vshrl.u32 %v104, 7
    %v106 = vsub.s32 0, %v105
    %v107 = vrot.slane %v60, %v106
    %v108 = vmul.f32 %v102, %v107
    %v109 = vmul.f32 %v103, %v107
    %v110 = vlaneseq
    %v111 = vshrl.u32 %v110, 7
    %v112 = vsub.s32 0, %v111
    %v113 = vrot.slane %v61, %v112
    %v114 = vadd.f32 %v108, %v113
    %v115 = vadd.f32 %v109, %v113
    %v116 = vlaneseq
    %v117 = vshrl.u32 %v116, 7
    %v118 = vsub.s32 0, %v117
    %v119 = vrot.slane %v56, %v118
    %v121 = vsel %vm76, %v114, 0
    %v124 = vsel %vm76, %v115, 0
    %126 = vmatprep.subr.mxu0 0.0
    %127 = vmatpush1.msra.mxu0 %v68
    %128 = vmatprep.subr.mxu0 0.0
    %129 = vmatpush1.msra.mxu0 %v69
    %130 = vmatprep.subr.mxu0 0.0
    %131 = vmatpush1.msra.mxu0 %v70
    %132 = vmatprep.subr.mxu0 0.0
    %133 = vmatpush1.msra.mxu0 %v71
    %134 = vmatprep.subr.mxu0 0.0
    %135 = vmatpush1.msra.mxu0 0.0
    %136 = vmatprep.subr.mxu0 0.0
    %137 = vmatpush1.msra.mxu0 0.0
    %138 = vmatprep.subr.mxu0 0.0
    %139 = vmatpush1.msra.mxu0 0.0
    %140 = vmatprep.subr.mxu0 0.0
    %141 = vmatpush1.msra.mxu0 0.0
    %142 = vmatprep.subr.mxu0 0.0
    %143 = vmatpush1.msra.mxu0 0.0
    %144 = vmatprep.subr.mxu0 0.0
    %145 = vmatpush1.msra.mxu0 0.0
    %146 = vmatprep.subr.mxu0 0.0
    %147 = vmatpush1.msra.mxu0 0.0
    %148 = vmatprep.subr.mxu0 0.0
    %149 = vmatpush1.msra.mxu0 0.0
    %150 = vmatprep.subr.mxu0 0.0
    %151 = vmatpush1.msra.mxu0 0.0
    %152 = vmatprep.subr.mxu0 0.0
    %153 = vmatpush1.msra.mxu0 0.0
    %154 = vmatprep.subr.mxu0 0.0
    %155 = vmatpush1.msra.mxu0 0.0
    %156 = vmatprep.subr.mxu0 0.0
    %157 = vmatpush1.msra.mxu0 0.0
    %158 = vmatprep.subr.mxu0 0.0
    %159 = vmatpush1.msra.mxu0 0.0
    %160 = vmatprep.subr.mxu0 0.0
    %161 = vmatpush1.msra.mxu0 0.0
    %162 = vmatprep.subr.mxu0 0.0
    %163 = vmatpush1.msra.mxu0 0.0
    %164 = vmatprep.subr.mxu0 0.0
    %165 = vmatpush1.msra.mxu0 0.0
    %166 = vmatprep.subr.mxu0 0.0
    %167 = vmatpush1.msra.mxu0 0.0
    %168 = vmatprep.subr.mxu0 0.0
    %169 = vmatpush1.msra.mxu0 0.0
    %170 = vmatprep.subr.mxu0 0.0
    %171 = vmatpush1.msra.mxu0 0.0
    %172 = vmatprep.subr.mxu0 0.0
    %173 = vmatpush1.msra.mxu0 0.0
    %174 = vmatprep.subr.mxu0 0.0
    %175 = vmatpush1.msra.mxu0 0.0
    %176 = vmatprep.subr.mxu0 0.0
    %177 = vmatpush1.msra.mxu0 0.0
    %178 = vmatprep.subr.mxu0 0.0
    %179 = vmatpush1.msra.mxu0 0.0
    %180 = vmatprep.subr.mxu0 0.0
    %181 = vmatpush1.msra.mxu0 0.0
    %182 = vmatprep.subr.mxu0 0.0
    %183 = vmatpush1.msra.mxu0 0.0
    %184 = vmatprep.subr.mxu0 0.0
    %185 = vmatpush1.msra.mxu0 0.0
    %186 = vmatprep.subr.mxu0 0.0
    %187 = vmatpush1.msra.mxu0 0.0
    %188 = vmatprep.subr.mxu0 0.0
    %189 = vmatpush1.msra.mxu0 0.0
    %190 = vmatprep.mubr.f32.mxu0 0.0
    %191 = vmatmul.mubr.f32.gmra.mrb[0].mxu0 %v121
    %v192 = vpop.f32.mrb[0].mxu0
    %v193 = vadd.f32 %v119, %v192
    %v194 = vpop.f32.mrb[0].mxu0
    %195 = vmatprep.mubr.f32.mxu0 0.0
    %196 = vmatmul.mubr.f32.gmra.mrb[0].mxu0 %v124
    %v197 = vpop.f32.mrb[0].mxu0
    %v198 = vadd.f32 %v119, %v197
    %v199 = vpop.f32.mrb[0].mxu0
    %200 = vdwg.mxu0
    %201 = vmatprep.subr.mxu0 0.0
    %202 = vmatpush1.msra.mxu0 %v64
    %203 = vmatprep.subr.mxu0 0.0
    %204 = vmatpush1.msra.mxu0 %v65
    %205 = vmatprep.subr.mxu0 0.0
    %206 = vmatpush1.msra.mxu0 %v66
    %207 = vmatprep.subr.mxu0 0.0
    %208 = vmatpush1.msra.mxu0 %v67
    %209 = vmatprep.subr.mxu0 0.0
    %210 = vmatpush1.msra.mxu0 0.0
    %211 = vmatprep.subr.mxu0 0.0
    %212 = vmatpush1.msra.mxu0 0.0
    %213 = vmatprep.subr.mxu0 0.0
    %214 = vmatpush1.msra.mxu0 0.0
    %215 = vmatprep.subr.mxu0 0.0
    %216 = vmatpush1.msra.mxu0 0.0
    %217 = vmatprep.subr.mxu0 0.0
    %218 = vmatpush1.msra.mxu0 0.0
    %219 = vmatprep.subr.mxu0 0.0
    %220 = vmatpush1.msra.mxu0 0.0
    %221 = vmatprep.subr.mxu0 0.0
    %222 = vmatpush1.msra.mxu0 0.0
    %223 = vmatprep.subr.mxu0 0.0
    %224 = vmatpush1.msra.mxu0 0.0
    %225 = vmatprep.subr.mxu0 0.0
    %226 = vmatpush1.msra.mxu0 0.0
    %227 = vmatprep.subr.mxu0 0.0
    %228 = vmatpush1.msra.mxu0 0.0
    %229 = vmatprep.subr.mxu0 0.0
    %230 = vmatpush1.msra.mxu0 0.0
    %231 = vmatprep.subr.mxu0 0.0
    %232 = vmatpush1.msra.mxu0 0.0
    %233 = vmatprep.subr.mxu0 0.0
    %234 = vmatpush1.msra.mxu0 0.0
    %235 = vmatprep.subr.mxu0 0.0
    %236 = vmatpush1.msra.mxu0 0.0
    %237 = vmatprep.subr.mxu0 0.0
    %238 = vmatpush1.msra.mxu0 0.0
    %239 = vmatprep.subr.mxu0 0.0
    %240 = vmatpush1.msra.mxu0 0.0
    %241 = vmatprep.subr.mxu0 0.0
    %242 = vmatpush1.msra.mxu0 0.0
    %243 = vmatprep.subr.mxu0 0.0
    %244 = vmatpush1.msra.mxu0 0.0
    %245 = vmatprep.subr.mxu0 0.0
    %246 = vmatpush1.msra.mxu0 0.0
    %247 = vmatprep.subr.mxu0 0.0
    %248 = vmatpush1.msra.mxu0 0.0
    %249 = vmatprep.subr.mxu0 0.0
    %250 = vmatpush1.msra.mxu0 0.0
    %251 = vmatprep.subr.mxu0 0.0
    %252 = vmatpush1.msra.mxu0 0.0
    %253 = vmatprep.subr.mxu0 0.0
    %254 = vmatpush1.msra.mxu0 0.0
    %255 = vmatprep.subr.mxu0 0.0
    %256 = vmatpush1.msra.mxu0 0.0
    %257 = vmatprep.subr.mxu0 0.0
    %258 = vmatpush1.msra.mxu0 0.0
    %259 = vmatprep.subr.mxu0 0.0
    %260 = vmatpush1.msra.mxu0 0.0
    %261 = vmatprep.subr.mxu0 0.0
    %262 = vmatpush1.msra.mxu0 0.0
    %263 = vmatprep.subr.mxu0 0.0
    %264 = vmatpush1.msra.mxu0 0.0
    %265 = vmatprep.mubr.f32.mxu0 0.0
    %266 = vmatmul.mubr.f32.gmra.mrb[0].mxu0 %v121
    %v267 = vpop.f32.mrb[0].mxu0
    %v268 = vadd.f32 0.0, %v267
    %v269 = vpop.f32.mrb[0].mxu0
    %270 = vmatprep.mubr.f32.mxu0 0.0
    %271 = vmatmul.mubr.f32.gmra.mrb[0].mxu0 %v124
    %v272 = vpop.f32.mrb[0].mxu0
    %v273 = vadd.f32 0.0, %v272
    %v274 = vpop.f32.mrb[0].mxu0
    %275 = vdwg.mxu0
    %v276 = vlaneseq
    %v277 = vshrl.u32 %v276, 7
    %v278 = vsub.s32 0, %v277
    %v279 = vrot.slane %v58, %v278
    %281 = vrot.lane.b32.xlu0 %v193, 96
    %v282 = vpop.permute.xlu0 %281
    %vm283 = vcmask 64512
    %v284 = vsel %vm283, %v193, 0
    %v286 = vsel %vm283, %v282, 0
    %288 = vmatprep.subr.mxu0 0.0
    %289 = vmatpush1.xpose.msra.mxu0 %v286
    %290 = vmatprep.subr.mxu0 0.0
    %291 = vmatpush1.xpose.msra.mxu0 0.0
    %292 = vmatprep.subr.mxu0 0.0
    %293 = vmatpush1.xpose.msra.mxu0 0.0
    %294 = vmatprep.subr.mxu0 0.0
    %295 = vmatpush1.xpose.msra.mxu0 0.0
    %296 = vmatprep.subr.mxu0 0.0
    %297 = vmatpush1.xpose.msra.mxu0 0.0
    %298 = vmatprep.subr.mxu0 0.0
    %299 = vmatpush1.xpose.msra.mxu0 0.0
    %300 = vmatprep.subr.mxu0 0.0
    %301 = vmatpush1.xpose.msra.mxu0 0.0
    %302 = vmatprep.subr.mxu0 0.0
    %303 = vmatpush1.xpose.msra.mxu0 0.0
    %304 = vmatprep.subr.mxu0 0.0
    %305 = vmatpush1.xpose.msra.mxu0 0.0
    %306 = vmatprep.subr.mxu0 0.0
    %307 = vmatpush1.xpose.msra.mxu0 0.0
    %308 = vmatprep.subr.mxu0 0.0
    %309 = vmatpush1.xpose.msra.mxu0 0.0
    %310 = vmatprep.subr.mxu0 0.0
    %311 = vmatpush1.xpose.msra.mxu0 0.0
    %312 = vmatprep.subr.mxu0 0.0
    %313 = vmatpush1.xpose.msra.mxu0 0.0
    %314 = vmatprep.subr.mxu0 0.0
    %315 = vmatpush1.xpose.msra.mxu0 0.0
    %316 = vmatprep.subr.mxu0 0.0
    %317 = vmatpush1.xpose.msra.mxu0 0.0
    %318 = vmatprep.subr.mxu0 0.0
    %319 = vmatpush1.xpose.msra.mxu0 0.0
    %320 = vmatprep.subr.mxu0 0.0
    %321 = vmatpush1.xpose.msra.mxu0 0.0
    %322 = vmatprep.subr.mxu0 0.0
    %323 = vmatpush1.xpose.msra.mxu0 0.0
    %324 = vmatprep.subr.mxu0 0.0
    %325 = vmatpush1.xpose.msra.mxu0 0.0
    %326 = vmatprep.subr.mxu0 0.0
    %327 = vmatpush1.xpose.msra.mxu0 0.0
    %328 = vmatprep.subr.mxu0 0.0
    %329 = vmatpush1.xpose.msra.mxu0 0.0
    %330 = vmatprep.subr.mxu0 0.0
    %331 = vmatpush1.xpose.msra.mxu0 0.0
    %332 = vmatprep.subr.mxu0 0.0
    %333 = vmatpush1.xpose.msra.mxu0 0.0
    %334 = vmatprep.subr.mxu0 0.0
    %335 = vmatpush1.xpose.msra.mxu0 0.0
    %336 = vmatprep.subr.mxu0 0.0
    %337 = vmatpush1.xpose.msra.mxu0 0.0
    %338 = vmatprep.subr.mxu0 0.0
    %339 = vmatpush1.xpose.msra.mxu0 0.0
    %340 = vmatprep.subr.mxu0 0.0
    %341 = vmatpush1.xpose.msra.mxu0 0.0
    %342 = vmatprep.subr.mxu0 0.0
    %343 = vmatpush1.xpose.msra.mxu0 0.0
    %344 = vmatprep.subr.mxu0 0.0
    %345 = vmatpush1.xpose.msra.mxu0 0.0
    %346 = vmatprep.subr.mxu0 0.0
    %347 = vmatpush1.xpose.msra.mxu0 0.0
    %348 = vmatprep.subr.mxu0 0.0
    %349 = vmatpush1.xpose.msra.mxu0 0.0
    %350 = vmatprep.subr.mxu0 0.0
    %351 = vmatpush1.xpose.msra.mxu0 0.0
    %352 = vmatprep.mubr.f32.mxu0 0.0
    %353 = vmatmul.mubr.f32.gmra.mrb[0].mxu0 %v284
    %v354 = vpop.f32.mrb[0].mxu0
    %v355 = vadd.f32 0.0, %v354
    %v356 = vpop.f32.mrb[0].mxu0
    %357 = vdwg.mxu0
    %359 = vrot.lane.b32.xlu0 %v198, 96
    %v360 = vpop.permute.xlu0 %359
    %v361 = vsel %vm283, %v198, 0
    %v363 = vsel %vm283, %v360, 0
    %365 = vmatprep.subr.mxu0 0.0
    %366 = vmatpush1.xpose.msra.mxu0 %v363
    %367 = vmatprep.subr.mxu0 0.0
    %368 = vmatpush1.xpose.msra.mxu0 0.0
    %369 = vmatprep.subr.mxu0 0.0
    %370 = vmatpush1.xpose.msra.mxu0 0.0
    %371 = vmatprep.subr.mxu0 0.0
    %372 = vmatpush1.xpose.msra.mxu0 0.0
    %373 = vmatprep.subr.mxu0 0.0
    %374 = vmatpush1.xpose.msra.mxu0 0.0
    %375 = vmatprep.subr.mxu0 0.0
    %376 = vmatpush1.xpose.msra.mxu0 0.0
    %377 = vmatprep.subr.mxu0 0.0
    %378 = vmatpush1.xpose.msra.mxu0 0.0
    %379 = vmatprep.subr.mxu0 0.0
    %380 = vmatpush1.xpose.msra.mxu0 0.0
    %381 = vmatprep.subr.mxu0 0.0
    %382 = vmatpush1.xpose.msra.mxu0 0.0
    %383 = vmatprep.subr.mxu0 0.0
    %384 = vmatpush1.xpose.msra.mxu0 0.0
    %385 = vmatprep.subr.mxu0 0.0
    %386 = vmatpush1.xpose.msra.mxu0 0.0
    %387 = vmatprep.subr.mxu0 0.0
    %388 = vmatpush1.xpose.msra.mxu0 0.0
    %389 = vmatprep.subr.mxu0 0.0
    %390 = vmatpush1.xpose.msra.mxu0 0.0
    %391 = vmatprep.subr.mxu0 0.0
    %392 = vmatpush1.xpose.msra.mxu0 0.0
    %393 = vmatprep.subr.mxu0 0.0
    %394 = vmatpush1.xpose.msra.mxu0 0.0
    %395 = vmatprep.subr.mxu0 0.0
    %396 = vmatpush1.xpose.msra.mxu0 0.0
    %397 = vmatprep.subr.mxu0 0.0
    %398 = vmatpush1.xpose.msra.mxu0 0.0
    %399 = vmatprep.subr.mxu0 0.0
    %400 = vmatpush1.xpose.msra.mxu0 0.0
    %401 = vmatprep.subr.mxu0 0.0
    %402 = vmatpush1.xpose.msra.mxu0 0.0
    %403 = vmatprep.subr.mxu0 0.0
    %404 = vmatpush1.xpose.msra.mxu0 0.0
    %405 = vmatprep.subr.mxu0 0.0
    %406 = vmatpush1.xpose.msra.mxu0 0.0
    %407 = vmatprep.subr.mxu0 0.0
    %408 = vmatpush1.xpose.msra.mxu0 0.0
    %409 = vmatprep.subr.mxu0 0.0
    %410 = vmatpush1.xpose.msra.mxu0 0.0
    %411 = vmatprep.subr.mxu0 0.0
    %412 = vmatpush1.xpose.msra.mxu0 0.0
    %413 = vmatprep.subr.mxu0 0.0
    %414 = vmatpush1.xpose.msra.mxu0 0.0
    %415 = vmatprep.subr.mxu0 0.0
    %416 = vmatpush1.xpose.msra.mxu0 0.0
    %417 = vmatprep.subr.mxu0 0.0
    %418 = vmatpush1.xpose.msra.mxu0 0.0
    %419 = vmatprep.subr.mxu0 0.0
    %420 = vmatpush1.xpose.msra.mxu0 0.0
    %421 = vmatprep.subr.mxu0 0.0
    %422 = vmatpush1.xpose.msra.mxu0 0.0
    %423 = vmatprep.subr.mxu0 0.0
    %424 = vmatpush1.xpose.msra.mxu0 0.0
    %425 = vmatprep.subr.mxu0 0.0
    %426 = vmatpush1.xpose.msra.mxu0 0.0
    %427 = vmatprep.subr.mxu0 0.0
    %428 = vmatpush1.xpose.msra.mxu0 0.0
    %429 = vmatprep.mubr.f32.mxu0 0.0
    %430 = vmatmul.mubr.f32.gmra.mrb[0].mxu0 %v361
    %v431 = vpop.f32.mrb[0].mxu0
    %v432 = vadd.f32 0.0, %v431
    %v433 = vpop.f32.mrb[0].mxu0
    %434 = vdwg.mxu0
    %v435 = vsel %vm283, %v355, -inf
    %436 = vmax.xlane.f32.xlu0 %v435
    %v437 = vpop.xlane.xlu0 %436
    %v438 = vsel %vm283, %v432, -inf
    %439 = vmax.xlane.f32.xlu0 %v438
    %v440 = vpop.xlane.xlu0 %439
    %v441 = vsub.f32 %v355, %v437
    %v442 = vsub.f32 %v432, %v440
    %v443 = vmul.f32 %v441, 1.442695
    %v444 = vpow.pop %v443
    %v445 = vmul.f32 %v442, 1.442695
    %v446 = vpow.pop %v445
    %v447 = vsel %vm283, %v444, 0.0
    %448 = vadd.xlane.f32.xlu0 %v447
    %v449 = vpop.xlane.xlu0 %448
    %v450 = vsel %vm283, %v446, 0.0
    %451 = vadd.xlane.f32.xlu0 %v450
    %v452 = vpop.xlane.xlu0 %451
    %v453 = vrcp.pop %v449
    %v454 = vrcp.pop %v452
    %v455 = vmul.f32 %v444, %v453
    %v456 = vmul.f32 %v446, %v454
    %v458 = vsel %vm283, %v455, 0
    %460 = vmatprep.subr.mxu0 0.0
    %461 = vmatpush1.msra.mxu0 %v268
    %462 = vmatprep.subr.mxu0 0.0
    %463 = vmatpush1.msra.mxu0 0.0
    %464 = vmatprep.subr.mxu0 0.0
    %465 = vmatpush1.msra.mxu0 0.0
    %466 = vmatprep.subr.mxu0 0.0
    %467 = vmatpush1.msra.mxu0 0.0
    %468 = vmatprep.subr.mxu0 0.0
    %469 = vmatpush1.msra.mxu0 0.0
    %470 = vmatprep.subr.mxu0 0.0
    %471 = vmatpush1.msra.mxu0 0.0
    %472 = vmatprep.subr.mxu0 0.0
    %473 = vmatpush1.msra.mxu0 0.0
    %474 = vmatprep.subr.mxu0 0.0
    %475 = vmatpush1.msra.mxu0 0.0
    %476 = vmatprep.subr.mxu0 0.0
    %477 = vmatpush1.msra.mxu0 0.0
    %478 = vmatprep.subr.mxu0 0.0
    %479 = vmatpush1.msra.mxu0 0.0
    %480 = vmatprep.subr.mxu0 0.0
    %481 = vmatpush1.msra.mxu0 0.0
    %482 = vmatprep.subr.mxu0 0.0
    %483 = vmatpush1.msra.mxu0 0.0
    %484 = vmatprep.subr.mxu0 0.0
    %485 = vmatpush1.msra.mxu0 0.0
    %486 = vmatprep.subr.mxu0 0.0
    %487 = vmatpush1.msra.mxu0 0.0
    %488 = vmatprep.subr.mxu0 0.0
    %489 = vmatpush1.msra.mxu0 0.0
    %490 = vmatprep.subr.mxu0 0.0
    %491 = vmatpush1.msra.mxu0 0.0
    %492 = vmatprep.subr.mxu0 0.0
    %493 = vmatpush1.msra.mxu0 0.0
    %494 = vmatprep.subr.mxu0 0.0
    %495 = vmatpush1.msra.mxu0 0.0
    %496 = vmatprep.subr.mxu0 0.0
    %497 = vmatpush1.msra.mxu0 0.0
    %498 = vmatprep.subr.mxu0 0.0
    %499 = vmatpush1.msra.mxu0 0.0
    %500 = vmatprep.subr.mxu0 0.0
    %501 = vmatpush1.msra.mxu0 0.0
    %502 = vmatprep.subr.mxu0 0.0
    %503 = vmatpush1.msra.mxu0 0.0
    %504 = vmatprep.subr.mxu0 0.0
    %505 = vmatpush1.msra.mxu0 0.0
    %506 = vmatprep.subr.mxu0 0.0
    %507 = vmatpush1.msra.mxu0 0.0
    %508 = vmatprep.subr.mxu0 0.0
    %509 = vmatpush1.msra.mxu0 0.0
    %510 = vmatprep.subr.mxu0 0.0
    %511 = vmatpush1.msra.mxu0 0.0
    %512 = vmatprep.subr.mxu0 0.0
    %513 = vmatpush1.msra.mxu0 0.0
    %514 = vmatprep.subr.mxu0 0.0
    %515 = vmatpush1.msra.mxu0 0.0
    %516 = vmatprep.subr.mxu0 0.0
    %517 = vmatpush1.msra.mxu0 0.0
    %518 = vmatprep.subr.mxu0 0.0
    %519 = vmatpush1.msra.mxu0 0.0
    %520 = vmatprep.subr.mxu0 0.0
    %521 = vmatpush1.msra.mxu0 0.0
    %522 = vmatprep.subr.mxu0 0.0
    %523 = vmatpush1.msra.mxu0 0.0
    %524 = vmatprep.mubr.f32.mxu0 0.0
    %525 = vmatmul.mubr.f32.gmra.mrb[0].mxu0 %v458
    %v526 = vpop.f32.mrb[0].mxu0
    %v527 = vadd.f32 0.0, %v526
    %v528 = vpop.f32.mrb[0].mxu0
    %529 = vdwg.mxu0
    %v531 = vsel %vm283, %v456, 0
    %533 = vmatprep.subr.mxu0 0.0
    %534 = vmatpush1.msra.mxu0 %v273
    %535 = vmatprep.subr.mxu0 0.0
    %536 = vmatpush1.msra.mxu0 0.0
    %537 = vmatprep.subr.mxu0 0.0
    %538 = vmatpush1.msra.mxu0 0.0
    %539 = vmatprep.subr.mxu0 0.0
    %540 = vmatpush1.msra.mxu0 0.0
    %541 = vmatprep.subr.mxu0 0.0
    %542 = vmatpush1.msra.mxu0 0.0
    %543 = vmatprep.subr.mxu0 0.0
    %544 = vmatpush1.msra.mxu0 0.0
    %545 = vmatprep.subr.mxu0 0.0
    %546 = vmatpush1.msra.mxu0 0.0
    %547 = vmatprep.subr.mxu0 0.0
    %548 = vmatpush1.msra.mxu0 0.0
    %549 = vmatprep.subr.mxu0 0.0
    %550 = vmatpush1.msra.mxu0 0.0
    %551 = vmatprep.subr.mxu0 0.0
    %552 = vmatpush1.msra.mxu0 0.0
    %553 = vmatprep.subr.mxu0 0.0
    %554 = vmatpush1.msra.mxu0 0.0
    %555 = vmatprep.subr.mxu0 0.0
    %556 = vmatpush1.msra.mxu0 0.0
    %557 = vmatprep.subr.mxu0 0.0
    %558 = vmatpush1.msra.mxu0 0.0
    %559 = vmatprep.subr.mxu0 0.0
    %560 = vmatpush1.msra.mxu0 0.0
    %561 = vmatprep.subr.mxu0 0.0
    %562 = vmatpush1.msra.mxu0 0.0
    %563 = vmatprep.subr.mxu0 0.0
    %564 = vmatpush1.msra.mxu0 0.0
    %565 = vmatprep.subr.mxu0 0.0
    %566 = vmatpush1.msra.mxu0 0.0
    %567 = vmatprep.subr.mxu0 0.0
    %568 = vmatpush1.msra.mxu0 0.0
    %569 = vmatprep.subr.mxu0 0.0
    %570 = vmatpush1.msra.mxu0 0.0
    %571 = vmatprep.subr.mxu0 0.0
    %572 = vmatpush1.msra.mxu0 0.0
    %573 = vmatprep.subr.mxu0 0.0
    %574 = vmatpush1.msra.mxu0 0.0
    %575 = vmatprep.subr.mxu0 0.0
    %576 = vmatpush1.msra.mxu0 0.0
    %577 = vmatprep.subr.mxu0 0.0
    %578 = vmatpush1.msra.mxu0 0.0
    %579 = vmatprep.subr.mxu0 0.0
    %580 = vmatpush1.msra.mxu0 0.0
    %581 = vmatprep.subr.mxu0 0.0
    %582 = vmatpush1.msra.mxu0 0.0
    %583 = vmatprep.subr.mxu0 0.0
    %584 = vmatpush1.msra.mxu0 0.0
    %585 = vmatprep.subr.mxu0 0.0
    %586 = vmatpush1.msra.mxu0 0.0
    %587 = vmatprep.subr.mxu0 0.0
    %588 = vmatpush1.msra.mxu0 0.0
    %589 = vmatprep.subr.mxu0 0.0
    %590 = vmatpush1.msra.mxu0 0.0
    %591 = vmatprep.subr.mxu0 0.0
    %592 = vmatpush1.msra.mxu0 0.0
    %593 = vmatprep.subr.mxu0 0.0
    %594 = vmatpush1.msra.mxu0 0.0
    %595 = vmatprep.subr.mxu0 0.0
    %596 = vmatpush1.msra.mxu0 0.0
    %597 = vmatprep.mubr.f32.mxu0 0.0
    %598 = vmatmul.mubr.f32.gmra.mrb[0].mxu0 %v531
    %v599 = vpop.f32.mrb[0].mxu0
    %v600 = vadd.f32 0.0, %v599
    %v601 = vpop.f32.mrb[0].mxu0
    %602 = vdwg.mxu0
    %v603 = vadd.f32 %v279, %v527
    %v604 = vadd.f32 %v279, %v600
    %605 = vrot.lane.b32.xlu0 %v193, 120
    %v606 = vpop.permute.xlu0 %605
    %607 = vrot.lane.b32.xlu0 %v193, 88
    %v608 = vpop.permute.xlu0 %607
    %v609 = vsel %vm283, %v606, 0
    %v611 = vsel %vm283, %v608, 0
    %613 = vmatprep.subr.mxu0 0.0
    %614 = vmatpush1.xpose.msra.mxu0 %v611
    %615 = vmatprep.subr.mxu0 0.0
    %616 = vmatpush1.xpose.msra.mxu0 0.0
    %617 = vmatprep.subr.mxu0 0.0
    %618 = vmatpush1.xpose.msra.mxu0 0.0
    %619 = vmatprep.subr.mxu0 0.0
    %620 = vmatpush1.xpose.msra.mxu0 0.0
    %621 = vmatprep.subr.mxu0 0.0
    %622 = vmatpush1.xpose.msra.mxu0 0.0
    %623 = vmatprep.subr.mxu0 0.0
    %624 = vmatpush1.xpose.msra.mxu0 0.0
    %625 = vmatprep.subr.mxu0 0.0
    %626 = vmatpush1.xpose.msra.mxu0 0.0
    %627 = vmatprep.subr.mxu0 0.0
    %628 = vmatpush1.xpose.msra.mxu0 0.0
    %629 = vmatprep.subr.mxu0 0.0
    %630 = vmatpush1.xpose.msra.mxu0 0.0
    %631 = vmatprep.subr.mxu0 0.0
    %632 = vmatpush1.xpose.msra.mxu0 0.0
    %633 = vmatprep.subr.mxu0 0.0
    %634 = vmatpush1.xpose.msra.mxu0 0.0
    %635 = vmatprep.subr.mxu0 0.0
    %636 = vmatpush1.xpose.msra.mxu0 0.0
    %637 = vmatprep.subr.mxu0 0.0
    %638 = vmatpush1.xpose.msra.mxu0 0.0
    %639 = vmatprep.subr.mxu0 0.0
    %640 = vmatpush1.xpose.msra.mxu0 0.0
    %641 = vmatprep.subr.mxu0 0.0
    %642 = vmatpush1.xpose.msra.mxu0 0.0
    %643 = vmatprep.subr.mxu0 0.0
    %644 = vmatpush1.xpose.msra.mxu0 0.0
    %645 = vmatprep.subr.mxu0 0.0
    %646 = vmatpush1.xpose.msra.mxu0 0.0
    %647 = vmatprep.subr.mxu0 0.0
    %648 = vmatpush1.xpose.msra.mxu0 0.0
    %649 = vmatprep.subr.mxu0 0.0
    %650 = vmatpush1.xpose.msra.mxu0 0.0
    %651 = vmatprep.subr.mxu0 0.0
    %652 = vmatpush1.xpose.msra.mxu0 0.0
    %653 = vmatprep.subr.mxu0 0.0
    %654 = vmatpush1.xpose.msra.mxu0 0.0
    %655 = vmatprep.subr.mxu0 0.0
    %656 = vmatpush1.xpose.msra.mxu0 0.0
    %657 = vmatprep.subr.mxu0 0.0
    %658 = vmatpush1.xpose.msra.mxu0 0.0
    %659 = vmatprep.subr.mxu0 0.0
    %660 = vmatpush1.xpose.msra.mxu0 0.0
    %661 = vmatprep.subr.mxu0 0.0
    %662 = vmatpush1.xpose.msra.mxu0 0.0
    %663 = vmatprep.subr.mxu0 0.0
    %664 = vmatpush1.xpose.msra.mxu0 0.0
    %665 = vmatprep.subr.mxu0 0.0
    %666 = vmatpush1.xpose.msra.mxu0 0.0
    %667 = vmatprep.subr.mxu0 0.0
    %668 = vmatpush1.xpose.msra.mxu0 0.0
    %669 = vmatprep.subr.mxu0 0.0
    %670 = vmatpush1.xpose.msra.mxu0 0.0
    %671 = vmatprep.subr.mxu0 0.0
    %672 = vmatpush1.xpose.msra.mxu0 0.0
    %673 = vmatprep.subr.mxu0 0.0
    %674 = vmatpush1.xpose.msra.mxu0 0.0
    %675 = vmatprep.subr.mxu0 0.0
    %676 = vmatpush1.xpose.msra.mxu0 0.0
    %677 = vmatprep.mubr.f32.mxu0 0.0
    %678 = vmatmul.mubr.f32.gmra.mrb[0].mxu0 %v609
    %v679 = vpop.f32.mrb[0].mxu0
    %v680 = vadd.f32 0.0, %v679
    %v681 = vpop.f32.mrb[0].mxu0
    %682 = vdwg.mxu0
    %683 = vrot.lane.b32.xlu0 %v198, 120
    %v684 = vpop.permute.xlu0 %683
    %685 = vrot.lane.b32.xlu0 %v198, 88
    %v686 = vpop.permute.xlu0 %685
    %v687 = vsel %vm283, %v684, 0
    %v689 = vsel %vm283, %v686, 0
    %691 = vmatprep.subr.mxu0 0.0
    %692 = vmatpush1.xpose.msra.mxu0 %v689
    %693 = vmatprep.subr.mxu0 0.0
    %694 = vmatpush1.xpose.msra.mxu0 0.0
    %695 = vmatprep.subr.mxu0 0.0
    %696 = vmatpush1.xpose.msra.mxu0 0.0
    %697 = vmatprep.subr.mxu0 0.0
    %698 = vmatpush1.xpose.msra.mxu0 0.0
    %699 = vmatprep.subr.mxu0 0.0
    %700 = vmatpush1.xpose.msra.mxu0 0.0
    %701 = vmatprep.subr.mxu0 0.0
    %702 = vmatpush1.xpose.msra.mxu0 0.0
    %703 = vmatprep.subr.mxu0 0.0
    %704 = vmatpush1.xpose.msra.mxu0 0.0
    %705 = vmatprep.subr.mxu0 0.0
    %706 = vmatpush1.xpose.msra.mxu0 0.0
    %707 = vmatprep.subr.mxu0 0.0
    %708 = vmatpush1.xpose.msra.mxu0 0.0
    %709 = vmatprep.subr.mxu0 0.0
    %710 = vmatpush1.xpose.msra.mxu0 0.0
    %711 = vmatprep.subr.mxu0 0.0
    %712 = vmatpush1.xpose.msra.mxu0 0.0
    %713 = vmatprep.subr.mxu0 0.0
    %714 = vmatpush1.xpose.msra.mxu0 0.0
    %715 = vmatprep.subr.mxu0 0.0
    %716 = vmatpush1.xpose.msra.mxu0 0.0
    %717 = vmatprep.subr.mxu0 0.0
    %718 = vmatpush1.xpose.msra.mxu0 0.0
    %719 = vmatprep.subr.mxu0 0.0
    %720 = vmatpush1.xpose.msra.mxu0 0.0
    %721 = vmatprep.subr.mxu0 0.0
    %722 = vmatpush1.xpose.msra.mxu0 0.0
    %723 = vmatprep.subr.mxu0 0.0
    %724 = vmatpush1.xpose.msra.mxu0 0.0
    %725 = vmatprep.subr.mxu0 0.0
    %726 = vmatpush1.xpose.msra.mxu0 0.0
    %727 = vmatprep.subr.mxu0 0.0
    %728 = vmatpush1.xpose.msra.mxu0 0.0
    %729 = vmatprep.subr.mxu0 0.0
    %730 = vmatpush1.xpose.msra.mxu0 0.0
    %731 = vmatprep.subr.mxu0 0.0
    %732 = vmatpush1.xpose.msra.mxu0 0.0
    %733 = vmatprep.subr.mxu0 0.0
    %734 = vmatpush1.xpose.msra.mxu0 0.0
    %735 = vmatprep.subr.mxu0 0.0
    %736 = vmatpush1.xpose.msra.mxu0 0.0
    %737 = vmatprep.subr.mxu0 0.0
    %738 = vmatpush1.xpose.msra.mxu0 0.0
    %739 = vmatprep.subr.mxu0 0.0
    %740 = vmatpush1.xpose.msra.mxu0 0.0
    %741 = vmatprep.subr.mxu0 0.0
    %742 = vmatpush1.xpose.msra.mxu0 0.0
    %743 = vmatprep.subr.mxu0 0.0
    %744 = vmatpush1.xpose.msra.mxu0 0.0
    %745 = vmatprep.subr.mxu0 0.0
    %746 = vmatpush1.xpose.msra.mxu0 0.0
    %747 = vmatprep.subr.mxu0 0.0
    %748 = vmatpush1.xpose.msra.mxu0 0.0
    %749 = vmatprep.subr.mxu0 0.0
    %750 = vmatpush1.xpose.msra.mxu0 0.0
    %751 = vmatprep.subr.mxu0 0.0
    %752 = vmatpush1.xpose.msra.mxu0 0.0
    %753 = vmatprep.subr.mxu0 0.0
    %754 = vmatpush1.xpose.msra.mxu0 0.0
    %755 = vmatprep.mubr.f32.mxu0 0.0
    %756 = vmatmul.mubr.f32.gmra.mrb[0].mxu0 %v687
    %v757 = vpop.f32.mrb[0].mxu0
    %v758 = vadd.f32 0.0, %v757
    %v759 = vpop.f32.mrb[0].mxu0
    %760 = vdwg.mxu0
    %v761 = vsel %vm283, %v680, -inf
    %762 = vmax.xlane.f32.xlu0 %v761
    %v763 = vpop.xlane.xlu0 %762
    %v764 = vsel %vm283, %v758, -inf
    %765 = vmax.xlane.f32.xlu0 %v764
    %v766 = vpop.xlane.xlu0 %765
    %v767 = vsub.f32 %v680, %v763
    %v768 = vsub.f32 %v758, %v766
    %v769 = vmul.f32 %v767, 1.442695
    %v770 = vpow.pop %v769
    %v771 = vmul.f32 %v768, 1.442695
    %v772 = vpow.pop %v771
    %v773 = vsel %vm283, %v770, 0.0
    %774 = vadd.xlane.f32.xlu0 %v773
    %v775 = vpop.xlane.xlu0 %774
    %v776 = vsel %vm283, %v772, 0.0
    %777 = vadd.xlane.f32.xlu0 %v776
    %v778 = vpop.xlane.xlu0 %777
    %v779 = vrcp.pop %v775
    %v780 = vrcp.pop %v778
    %v781 = vmul.f32 %v770, %v779
    %v782 = vmul.f32 %v772, %v780
    %784 = vrot.lane.b32.xlu0 %v268, 96
    %v785 = vpop.permute.xlu0 %784
    %v788 = vsel %vm283, %v781, 0
    %790 = vmatprep.subr.mxu0 0.0
    %791 = vmatpush1.msra.mxu0 %v785
    %792 = vmatprep.subr.mxu0 0.0
    %793 = vmatpush1.msra.mxu0 0.0
    %794 = vmatprep.subr.mxu0 0.0
    %795 = vmatpush1.msra.mxu0 0.0
    %796 = vmatprep.subr.mxu0 0.0
    %797 = vmatpush1.msra.mxu0 0.0
    %798 = vmatprep.subr.mxu0 0.0
    %799 = vmatpush1.msra.mxu0 0.0
    %800 = vmatprep.subr.mxu0 0.0
    %801 = vmatpush1.msra.mxu0 0.0
    %802 = vmatprep.subr.mxu0 0.0
    %803 = vmatpush1.msra.mxu0 0.0
    %804 = vmatprep.subr.mxu0 0.0
    %805 = vmatpush1.msra.mxu0 0.0
    %806 = vmatprep.subr.mxu0 0.0
    %807 = vmatpush1.msra.mxu0 0.0
    %808 = vmatprep.subr.mxu0 0.0
    %809 = vmatpush1.msra.mxu0 0.0
    %810 = vmatprep.subr.mxu0 0.0
    %811 = vmatpush1.msra.mxu0 0.0
    %812 = vmatprep.subr.mxu0 0.0
    %813 = vmatpush1.msra.mxu0 0.0
    %814 = vmatprep.subr.mxu0 0.0
    %815 = vmatpush1.msra.mxu0 0.0
    %816 = vmatprep.subr.mxu0 0.0
    %817 = vmatpush1.msra.mxu0 0.0
    %818 = vmatprep.subr.mxu0 0.0
    %819 = vmatpush1.msra.mxu0 0.0
    %820 = vmatprep.subr.mxu0 0.0
    %821 = vmatpush1.msra.mxu0 0.0
    %822 = vmatprep.subr.mxu0 0.0
    %823 = vmatpush1.msra.mxu0 0.0
    %824 = vmatprep.subr.mxu0 0.0
    %825 = vmatpush1.msra.mxu0 0.0
    %826 = vmatprep.subr.mxu0 0.0
    %827 = vmatpush1.msra.mxu0 0.0
    %828 = vmatprep.subr.mxu0 0.0
    %829 = vmatpush1.msra.mxu0 0.0
    %830 = vmatprep.subr.mxu0 0.0
    %831 = vmatpush1.msra.mxu0 0.0
    %832 = vmatprep.subr.mxu0 0.0
    %833 = vmatpush1.msra.mxu0 0.0
    %834 = vmatprep.subr.mxu0 0.0
    %835 = vmatpush1.msra.mxu0 0.0
    %836 = vmatprep.subr.mxu0 0.0
    %837 = vmatpush1.msra.mxu0 0.0
    %838 = vmatprep.subr.mxu0 0.0
    %839 = vmatpush1.msra.mxu0 0.0
    %840 = vmatprep.subr.mxu0 0.0
    %841 = vmatpush1.msra.mxu0 0.0
    %842 = vmatprep.subr.mxu0 0.0
    %843 = vmatpush1.msra.mxu0 0.0
    %844 = vmatprep.subr.mxu0 0.0
    %845 = vmatpush1.msra.mxu0 0.0
    %846 = vmatprep.subr.mxu0 0.0
    %847 = vmatpush1.msra.mxu0 0.0
    %848 = vmatprep.subr.mxu0 0.0
    %849 = vmatpush1.msra.mxu0 0.0
    %850 = vmatprep.subr.mxu0 0.0
    %851 = vmatpush1.msra.mxu0 0.0
    %852 = vmatprep.subr.mxu0 0.0
    %853 = vmatpush1.msra.mxu0 0.0
    %854 = vmatprep.mubr.f32.mxu0 0.0
    %855 = vmatmul.mubr.f32.gmra.mrb[0].mxu0 %v788
    %v856 = vpop.f32.mrb[0].mxu0
    %v857 = vadd.f32 0.0, %v856
    %v858 = vpop.f32.mrb[0].mxu0
    %859 = vdwg.mxu0
    %861 = vrot.lane.b32.xlu0 %v273, 96
    %v862 = vpop.permute.xlu0 %861
    %v865 = vsel %vm283, %v782, 0
    %867 = vmatprep.subr.mxu0 0.0
    %868 = vmatpush1.msra.mxu0 %v862
    %869 = vmatprep.subr.mxu0 0.0
    %870 = vmatpush1.msra.mxu0 0.0
    %871 = vmatprep.subr.mxu0 0.0
    %872 = vmatpush1.msra.mxu0 0.0
    %873 = vmatprep.subr.mxu0 0.0
    %874 = vmatpush1.msra.mxu0 0.0
    %875 = vmatprep.subr.mxu0 0.0
    %876 = vmatpush1.msra.mxu0 0.0
    %877 = vmatprep.subr.mxu0 0.0
    %878 = vmatpush1.msra.mxu0 0.0
    %879 = vmatprep.subr.mxu0 0.0
    %880 = vmatpush1.msra.mxu0 0.0
    %881 = vmatprep.subr.mxu0 0.0
    %882 = vmatpush1.msra.mxu0 0.0
    %883 = vmatprep.subr.mxu0 0.0
    %884 = vmatpush1.msra.mxu0 0.0
    %885 = vmatprep.subr.mxu0 0.0
    %886 = vmatpush1.msra.mxu0 0.0
    %887 = vmatprep.subr.mxu0 0.0
    %888 = vmatpush1.msra.mxu0 0.0
    %889 = vmatprep.subr.mxu0 0.0
    %890 = vmatpush1.msra.mxu0 0.0
    %891 = vmatprep.subr.mxu0 0.0
    %892 = vmatpush1.msra.mxu0 0.0
    %893 = vmatprep.subr.mxu0 0.0
    %894 = vmatpush1.msra.mxu0 0.0
    %895 = vmatprep.subr.mxu0 0.0
    %896 = vmatpush1.msra.mxu0 0.0
    %897 = vmatprep.subr.mxu0 0.0
    %898 = vmatpush1.msra.mxu0 0.0
    %899 = vmatprep.subr.mxu0 0.0
    %900 = vmatpush1.msra.mxu0 0.0
    %901 = vmatprep.subr.mxu0 0.0
    %902 = vmatpush1.msra.mxu0 0.0
    %903 = vmatprep.subr.mxu0 0.0
    %904 = vmatpush1.msra.mxu0 0.0
    %905 = vmatprep.subr.mxu0 0.0
    %906 = vmatpush1.msra.mxu0 0.0
    %907 = vmatprep.subr.mxu0 0.0
    %908 = vmatpush1.msra.mxu0 0.0
    %909 = vmatprep.subr.mxu0 0.0
    %910 = vmatpush1.msra.mxu0 0.0
    %911 = vmatprep.subr.mxu0 0.0
    %912 = vmatpush1.msra.mxu0 0.0
    %913 = vmatprep.subr.mxu0 0.0
    %914 = vmatpush1.msra.mxu0 0.0
    %915 = vmatprep.subr.mxu0 0.0
    %916 = vmatpush1.msra.mxu0 0.0
    %917 = vmatprep.subr.mxu0 0.0
    %918 = vmatpush1.msra.mxu0 0.0
    %919 = vmatprep.subr.mxu0 0.0
    %920 = vmatpush1.msra.mxu0 0.0
    %921 = vmatprep.subr.mxu0 0.0
    %922 = vmatpush1.msra.mxu0 0.0
    %923 = vmatprep.subr.mxu0 0.0
    %924 = vmatpush1.msra.mxu0 0.0
    %925 = vmatprep.subr.mxu0 0.0
    %926 = vmatpush1.msra.mxu0 0.0
    %927 = vmatprep.subr.mxu0 0.0
    %928 = vmatpush1.msra.mxu0 0.0
    %929 = vmatprep.subr.mxu0 0.0
    %930 = vmatpush1.msra.mxu0 0.0
    %931 = vmatprep.mubr.f32.mxu0 0.0
    %932 = vmatmul.mubr.f32.gmra.mrb[0].mxu0 %v865
    %v933 = vpop.f32.mrb[0].mxu0
    %v934 = vadd.f32 0.0, %v933
    %v935 = vpop.f32.mrb[0].mxu0
    %936 = vdwg.mxu0
    %v937 = vadd.f32 %v603, %v857
    %v938 = vadd.f32 %v604, %v934
    %939 = vrot.lane.b32.xlu0 %v193, 112
    %v940 = vpop.permute.xlu0 %939
    %941 = vrot.lane.b32.xlu0 %v193, 80
    %v942 = vpop.permute.xlu0 %941
    %v943 = vsel %vm283, %v940, 0
    %v945 = vsel %vm283, %v942, 0
    %947 = vmatprep.subr.mxu0 0.0
    %948 = vmatpush1.xpose.msra.mxu0 %v945
    %949 = vmatprep.subr.mxu0 0.0
    %950 = vmatpush1.xpose.msra.mxu0 0.0
    %951 = vmatprep.subr.mxu0 0.0
    %952 = vmatpush1.xpose.msra.mxu0 0.0
    %953 = vmatprep.subr.mxu0 0.0
    %954 = vmatpush1.xpose.msra.mxu0 0.0
    %955 = vmatprep.subr.mxu0 0.0
    %956 = vmatpush1.xpose.msra.mxu0 0.0
    %957 = vmatprep.subr.mxu0 0.0
    %958 = vmatpush1.xpose.msra.mxu0 0.0
    %959 = vmatprep.subr.mxu0 0.0
    %960 = vmatpush1.xpose.msra.mxu0 0.0
    %961 = vmatprep.subr.mxu0 0.0
    %962 = vmatpush1.xpose.msra.mxu0 0.0
    %963 = vmatprep.subr.mxu0 0.0
    %964 = vmatpush1.xpose.msra.mxu0 0.0
    %965 = vmatprep.subr.mxu0 0.0
    %966 = vmatpush1.xpose.msra.mxu0 0.0
    %967 = vmatprep.subr.mxu0 0.0
    %968 = vmatpush1.xpose.msra.mxu0 0.0
    %969 = vmatprep.subr.mxu0 0.0
    %970 = vmatpush1.xpose.msra.mxu0 0.0
    %971 = vmatprep.subr.mxu0 0.0
    %972 = vmatpush1.xpose.msra.mxu0 0.0
    %973 = vmatprep.subr.mxu0 0.0
    %974 = vmatpush1.xpose.msra.mxu0 0.0
    %975 = vmatprep.subr.mxu0 0.0
    %976 = vmatpush1.xpose.msra.mxu0 0.0
    %977 = vmatprep.subr.mxu0 0.0
    %978 = vmatpush1.xpose.msra.mxu0 0.0
    %979 = vmatprep.subr.mxu0 0.0
    %980 = vmatpush1.xpose.msra.mxu0 0.0
    %981 = vmatprep.subr.mxu0 0.0
    %982 = vmatpush1.xpose.msra.mxu0 0.0
    %983 = vmatprep.subr.mxu0 0.0
    %984 = vmatpush1.xpose.msra.mxu0 0.0
    %985 = vmatprep.subr.mxu0 0.0
    %986 = vmatpush1.xpose.msra.mxu0 0.0
    %987 = vmatprep.subr.mxu0 0.0
    %988 = vmatpush1.xpose.msra.mxu0 0.0
    %989 = vmatprep.subr.mxu0 0.0
    %990 = vmatpush1.xpose.msra.mxu0 0.0
    %991 = vmatprep.subr.mxu0 0.0
    %992 = vmatpush1.xpose.msra.mxu0 0.0
    %993 = vmatprep.subr.mxu0 0.0
    %994 = vmatpush1.xpose.msra.mxu0 0.0
    %995 = vmatprep.subr.mxu0 0.0
    %996 = vmatpush1.xpose.msra.mxu0 0.0
    %997 = vmatprep.subr.mxu0 0.0
    %998 = vmatpush1.xpose.msra.mxu0 0.0
    %999 = vmatprep.subr.mxu0 0.0
    %1000 = vmatpush1.xpose.msra.mxu0 0.0
    %1001 = vmatprep.subr.mxu0 0.0
    %1002 = vmatpush1.xpose.msra.mxu0 0.0
    %1003 = vmatprep.subr.mxu0 0.0
    %1004 = vmatpush1.xpose.msra.mxu0 0.0
    %1005 = vmatprep.subr.mxu0 0.0
    %1006 = vmatpush1.xpose.msra.mxu0 0.0
    %1007 = vmatprep.subr.mxu0 0.0
    %1008 = vmatpush1.xpose.msra.mxu0 0.0
    %1009 = vmatprep.subr.mxu0 0.0
    %1010 = vmatpush1.xpose.msra.mxu0 0.0
    %1011 = vmatprep.mubr.f32.mxu0 0.0
    %1012 = vmatmul.mubr.f32.gmra.mrb[0].mxu0 %v943
    %v1013 = vpop.f32.mrb[0].mxu0
    %v1014 = vadd.f32 0.0, %v1013
    %v1015 = vpop.f32.mrb[0].mxu0
    %1016 = vdwg.mxu0
    %1017 = vrot.lane.b32.xlu0 %v198, 112
    %v1018 = vpop.permute.xlu0 %1017
    %1019 = vrot.lane.b32.xlu0 %v198, 80
    %v1020 = vpop.permute.xlu0 %1019
    %v1021 = vsel %vm283, %v1018, 0
    %v1023 = vsel %vm283, %v1020, 0
    %1025 = vmatprep.subr.mxu0 0.0
    %1026 = vmatpush1.xpose.msra.mxu0 %v1023
    %1027 = vmatprep.subr.mxu0 0.0
    %1028 = vmatpush1.xpose.msra.mxu0 0.0
    %1029 = vmatprep.subr.mxu0 0.0
    %1030 = vmatpush1.xpose.msra.mxu0 0.0
    %1031 = vmatprep.subr.mxu0 0.0
    %1032 = vmatpush1.xpose.msra.mxu0 0.0
    %1033 = vmatprep.subr.mxu0 0.0
    %1034 = vmatpush1.xpose.msra.mxu0 0.0
    %1035 = vmatprep.subr.mxu0 0.0
    %1036 = vmatpush1.xpose.msra.mxu0 0.0
    %1037 = vmatprep.subr.mxu0 0.0
    %1038 = vmatpush1.xpose.msra.mxu0 0.0
    %1039 = vmatprep.subr.mxu0 0.0
    %1040 = vmatpush1.xpose.msra.mxu0 0.0
    %1041 = vmatprep.subr.mxu0 0.0
    %1042 = vmatpush1.xpose.msra.mxu0 0.0
    %1043 = vmatprep.subr.mxu0 0.0
    %1044 = vmatpush1.xpose.msra.mxu0 0.0
    %1045 = vmatprep.subr.mxu0 0.0
    %1046 = vmatpush1.xpose.msra.mxu0 0.0
    %1047 = vmatprep.subr.mxu0 0.0
    %1048 = vmatpush1.xpose.msra.mxu0 0.0
    %1049 = vmatprep.subr.mxu0 0.0
    %1050 = vmatpush1.xpose.msra.mxu0 0.0
    %1051 = vmatprep.subr.mxu0 0.0
    %1052 = vmatpush1.xpose.msra.mxu0 0.0
    %1053 = vmatprep.subr.mxu0 0.0
    %1054 = vmatpush1.xpose.msra.mxu0 0.0
    %1055 = vmatprep.subr.mxu0 0.0
    %1056 = vmatpush1.xpose.msra.mxu0 0.0
    %1057 = vmatprep.subr.mxu0 0.0
    %1058 = vmatpush1.xpose.msra.mxu0 0.0
    %1059 = vmatprep.subr.mxu0 0.0
    %1060 = vmatpush1.xpose.msra.mxu0 0.0
    %1061 = vmatprep.subr.mxu0 0.0
    %1062 = vmatpush1.xpose.msra.mxu0 0.0
    %1063 = vmatprep.subr.mxu0 0.0
    %1064 = vmatpush1.xpose.msra.mxu0 0.0
    %1065 = vmatprep.subr.mxu0 0.0
    %1066 = vmatpush1.xpose.msra.mxu0 0.0
    %1067 = vmatprep.subr.mxu0 0.0
    %1068 = vmatpush1.xpose.msra.mxu0 0.0
    %1069 = vmatprep.subr.mxu0 0.0
    %1070 = vmatpush1.xpose.msra.mxu0 0.0
    %1071 = vmatprep.subr.mxu0 0.0
    %1072 = vmatpush1.xpose.msra.mxu0 0.0
    %1073 = vmatprep.subr.mxu0 0.0
    %1074 = vmatpush1.xpose.msra.mxu0 0.0
    %1075 = vmatprep.subr.mxu0 0.0
    %1076 = vmatpush1.xpose.msra.mxu0 0.0
    %1077 = vmatprep.subr.mxu0 0.0
    %1078 = vmatpush1.xpose.msra.mxu0 0.0
    %1079 = vmatprep.subr.mxu0 0.0
    %1080 = vmatpush1.xpose.msra.mxu0 0.0
    %1081 = vmatprep.subr.mxu0 0.0
    %1082 = vmatpush1.xpose.msra.mxu0 0.0
    %1083 = vmatprep.subr.mxu0 0.0
    %1084 = vmatpush1.xpose.msra.mxu0 0.0
    %1085 = vmatprep.subr.mxu0 0.0
    %1086 = vmatpush1.xpose.msra.mxu0 0.0
    %1087 = vmatprep.subr.mxu0 0.0
    %1088 = vmatpush1.xpose.msra.mxu0 0.0
    %1089 = vmatprep.mubr.f32.mxu0 0.0
    %1090 = vmatmul.mubr.f32.gmra.mrb[0].mxu0 %v1021
    %v1091 = vpop.f32.mrb[0].mxu0
    %v1092 = vadd.f32 0.0, %v1091
    %v1093 = vpop.f32.mrb[0].mxu0
    %1094 = vdwg.mxu0
    %v1095 = vsel %vm283, %v1014, -inf
    %1096 = vmax.xlane.f32.xlu0 %v1095
    %v1097 = vpop.xlane.xlu0 %1096
    %v1098 = vsel %vm283, %v1092, -inf
    %1099 = vmax.xlane.f32.xlu0 %v1098
    %v1100 = vpop.xlane.xlu0 %1099
    %v1101 = vsub.f32 %v1014, %v1097
    %v1102 = vsub.f32 %v1092, %v1100
    %v1103 = vmul.f32 %v1101, 1.442695
    %v1104 = vpow.pop %v1103
    %v1105 = vmul.f32 %v1102, 1.442695
    %v1106 = vpow.pop %v1105
    %v1107 = vsel %vm283, %v1104, 0.0
    %1108 = vadd.xlane.f32.xlu0 %v1107
    %v1109 = vpop.xlane.xlu0 %1108
    %v1110 = vsel %vm283, %v1106, 0.0
    %1111 = vadd.xlane.f32.xlu0 %v1110
    %v1112 = vpop.xlane.xlu0 %1111
    %v1113 = vrcp.pop %v1109
    %v1114 = vrcp.pop %v1112
    %v1115 = vmul.f32 %v1104, %v1113
    %v1116 = vmul.f32 %v1106, %v1114
    %1117 = vrot.lane.b32.xlu0 %v268, 64
    %v1118 = vpop.permute.xlu0 %1117
    %v1121 = vsel %vm283, %v1115, 0
    %1123 = vmatprep.subr.mxu0 0.0
    %1124 = vmatpush1.msra.mxu0 %v1118
    %1125 = vmatprep.subr.mxu0 0.0
    %1126 = vmatpush1.msra.mxu0 0.0
    %1127 = vmatprep.subr.mxu0 0.0
    %1128 = vmatpush1.msra.mxu0 0.0
    %1129 = vmatprep.subr.mxu0 0.0
    %1130 = vmatpush1.msra.mxu0 0.0
    %1131 = vmatprep.subr.mxu0 0.0
    %1132 = vmatpush1.msra.mxu0 0.0
    %1133 = vmatprep.subr.mxu0 0.0
    %1134 = vmatpush1.msra.mxu0 0.0
    %1135 = vmatprep.subr.mxu0 0.0
    %1136 = vmatpush1.msra.mxu0 0.0
    %1137 = vmatprep.subr.mxu0 0.0
    %1138 = vmatpush1.msra.mxu0 0.0
    %1139 = vmatprep.subr.mxu0 0.0
    %1140 = vmatpush1.msra.mxu0 0.0
    %1141 = vmatprep.subr.mxu0 0.0
    %1142 = vmatpush1.msra.mxu0 0.0
    %1143 = vmatprep.subr.mxu0 0.0
    %1144 = vmatpush1.msra.mxu0 0.0
    %1145 = vmatprep.subr.mxu0 0.0
    %1146 = vmatpush1.msra.mxu0 0.0
    %1147 = vmatprep.subr.mxu0 0.0
    %1148 = vmatpush1.msra.mxu0 0.0
    %1149 = vmatprep.subr.mxu0 0.0
    %1150 = vmatpush1.msra.mxu0 0.0
    %1151 = vmatprep.subr.mxu0 0.0
    %1152 = vmatpush1.msra.mxu0 0.0
    %1153 = vmatprep.subr.mxu0 0.0
    %1154 = vmatpush1.msra.mxu0 0.0
    %1155 = vmatprep.subr.mxu0 0.0
    %1156 = vmatpush1.msra.mxu0 0.0
    %1157 = vmatprep.subr.mxu0 0.0
    %1158 = vmatpush1.msra.mxu0 0.0
    %1159 = vmatprep.subr.mxu0 0.0
    %1160 = vmatpush1.msra.mxu0 0.0
    %1161 = vmatprep.subr.mxu0 0.0
    %1162 = vmatpush1.msra.mxu0 0.0
    %1163 = vmatprep.subr.mxu0 0.0
    %1164 = vmatpush1.msra.mxu0 0.0
    %1165 = vmatprep.subr.mxu0 0.0
    %1166 = vmatpush1.msra.mxu0 0.0
    %1167 = vmatprep.subr.mxu0 0.0
    %1168 = vmatpush1.msra.mxu0 0.0
    %1169 = vmatprep.subr.mxu0 0.0
    %1170 = vmatpush1.msra.mxu0 0.0
    %1171 = vmatprep.subr.mxu0 0.0
    %1172 = vmatpush1.msra.mxu0 0.0
    %1173 = vmatprep.subr.mxu0 0.0
    %1174 = vmatpush1.msra.mxu0 0.0
    %1175 = vmatprep.subr.mxu0 0.0
    %1176 = vmatpush1.msra.mxu0 0.0
    %1177 = vmatprep.subr.mxu0 0.0
    %1178 = vmatpush1.msra.mxu0 0.0
    %1179 = vmatprep.subr.mxu0 0.0
    %1180 = vmatpush1.msra.mxu0 0.0
    %1181 = vmatprep.subr.mxu0 0.0
    %1182 = vmatpush1.msra.mxu0 0.0
    %1183 = vmatprep.subr.mxu0 0.0
    %1184 = vmatpush1.msra.mxu0 0.0
    %1185 = vmatprep.subr.mxu0 0.0
    %1186 = vmatpush1.msra.mxu0 0.0
    %1187 = vmatprep.mubr.f32.mxu0 0.0
    %1188 = vmatmul.mubr.f32.gmra.mrb[0].mxu0 %v1121
    %v1189 = vpop.f32.mrb[0].mxu0
    %v1190 = vadd.f32 0.0, %v1189
    %v1191 = vpop.f32.mrb[0].mxu0
    %1192 = vdwg.mxu0
    %1193 = vrot.lane.b32.xlu0 %v273, 64
    %v1194 = vpop.permute.xlu0 %1193
    %v1197 = vsel %vm283, %v1116, 0
    %1199 = vmatprep.subr.mxu0 0.0
    %1200 = vmatpush1.msra.mxu0 %v1194
    %1201 = vmatprep.subr.mxu0 0.0
    %1202 = vmatpush1.msra.mxu0 0.0
    %1203 = vmatprep.subr.mxu0 0.0
    %1204 = vmatpush1.msra.mxu0 0.0
    %1205 = vmatprep.subr.mxu0 0.0
    %1206 = vmatpush1.msra.mxu0 0.0
    %1207 = vmatprep.subr.mxu0 0.0
    %1208 = vmatpush1.msra.mxu0 0.0
    %1209 = vmatprep.subr.mxu0 0.0
    %1210 = vmatpush1.msra.mxu0 0.0
    %1211 = vmatprep.subr.mxu0 0.0
    %1212 = vmatpush1.msra.mxu0 0.0
    %1213 = vmatprep.subr.mxu0 0.0
    %1214 = vmatpush1.msra.mxu0 0.0
    %1215 = vmatprep.subr.mxu0 0.0
    %1216 = vmatpush1.msra.mxu0 0.0
    %1217 = vmatprep.subr.mxu0 0.0
    %1218 = vmatpush1.msra.mxu0 0.0
    %1219 = vmatprep.subr.mxu0 0.0
    %1220 = vmatpush1.msra.mxu0 0.0
    %1221 = vmatprep.subr.mxu0 0.0
    %1222 = vmatpush1.msra.mxu0 0.0
    %1223 = vmatprep.subr.mxu0 0.0
    %1224 = vmatpush1.msra.mxu0 0.0
    %1225 = vmatprep.subr.mxu0 0.0
    %1226 = vmatpush1.msra.mxu0 0.0
    %1227 = vmatprep.subr.mxu0 0.0
    %1228 = vmatpush1.msra.mxu0 0.0
    %1229 = vmatprep.subr.mxu0 0.0
    %1230 = vmatpush1.msra.mxu0 0.0
    %1231 = vmatprep.subr.mxu0 0.0
    %1232 = vmatpush1.msra.mxu0 0.0
    %1233 = vmatprep.subr.mxu0 0.0
    %1234 = vmatpush1.msra.mxu0 0.0
    %1235 = vmatprep.subr.mxu0 0.0
    %1236 = vmatpush1.msra.mxu0 0.0
    %1237 = vmatprep.subr.mxu0 0.0
    %1238 = vmatpush1.msra.mxu0 0.0
    %1239 = vmatprep.subr.mxu0 0.0
    %1240 = vmatpush1.msra.mxu0 0.0
    %1241 = vmatprep.subr.mxu0 0.0
    %1242 = vmatpush1.msra.mxu0 0.0
    %1243 = vmatprep.subr.mxu0 0.0
    %1244 = vmatpush1.msra.mxu0 0.0
    %1245 = vmatprep.subr.mxu0 0.0
    %1246 = vmatpush1.msra.mxu0 0.0
    %1247 = vmatprep.subr.mxu0 0.0
    %1248 = vmatpush1.msra.mxu0 0.0
    %1249 = vmatprep.subr.mxu0 0.0
    %1250 = vmatpush1.msra.mxu0 0.0
    %1251 = vmatprep.subr.mxu0 0.0
    %1252 = vmatpush1.msra.mxu0 0.0
    %1253 = vmatprep.subr.mxu0 0.0
    %1254 = vmatpush1.msra.mxu0 0.0
    %1255 = vmatprep.subr.mxu0 0.0
    %1256 = vmatpush1.msra.mxu0 0.0
    %1257 = vmatprep.subr.mxu0 0.0
    %1258 = vmatpush1.msra.mxu0 0.0
    %1259 = vmatprep.subr.mxu0 0.0
    %1260 = vmatpush1.msra.mxu0 0.0
    %1261 = vmatprep.subr.mxu0 0.0
    %1262 = vmatpush1.msra.mxu0 0.0
    %1263 = vmatprep.mubr.f32.mxu0 0.0
    %1264 = vmatmul.mubr.f32.gmra.mrb[0].mxu0 %v1197
    %v1265 = vpop.f32.mrb[0].mxu0
    %v1266 = vadd.f32 0.0, %v1265
    %v1267 = vpop.f32.mrb[0].mxu0
    %1268 = vdwg.mxu0
    %v1269 = vadd.f32 %v937, %v1190
    %v1270 = vadd.f32 %v938, %v1266
    %1271 = vrot.lane.b32.xlu0 %v193, 104
    %v1272 = vpop.permute.xlu0 %1271
    %1273 = vrot.lane.b32.xlu0 %v193, 72
    %v1274 = vpop.permute.xlu0 %1273
    %v1275 = vsel %vm283, %v1272, 0
    %v1277 = vsel %vm283, %v1274, 0
    %1279 = vmatprep.subr.mxu0 0.0
    %1280 = vmatpush1.xpose.msra.mxu0 %v1277
    %1281 = vmatprep.subr.mxu0 0.0
    %1282 = vmatpush1.xpose.msra.mxu0 0.0
    %1283 = vmatprep.subr.mxu0 0.0
    %1284 = vmatpush1.xpose.msra.mxu0 0.0
    %1285 = vmatprep.subr.mxu0 0.0
    %1286 = vmatpush1.xpose.msra.mxu0 0.0
    %1287 = vmatprep.subr.mxu0 0.0
    %1288 = vmatpush1.xpose.msra.mxu0 0.0
    %1289 = vmatprep.subr.mxu0 0.0
    %1290 = vmatpush1.xpose.msra.mxu0 0.0
    %1291 = vmatprep.subr.mxu0 0.0
    %1292 = vmatpush1.xpose.msra.mxu0 0.0
    %1293 = vmatprep.subr.mxu0 0.0
    %1294 = vmatpush1.xpose.msra.mxu0 0.0
    %1295 = vmatprep.subr.mxu0 0.0
    %1296 = vmatpush1.xpose.msra.mxu0 0.0
    %1297 = vmatprep.subr.mxu0 0.0
    %1298 = vmatpush1.xpose.msra.mxu0 0.0
    %1299 = vmatprep.subr.mxu0 0.0
    %1300 = vmatpush1.xpose.msra.mxu0 0.0
    %1301 = vmatprep.subr.mxu0 0.0
    %1302 = vmatpush1.xpose.msra.mxu0 0.0
    %1303 = vmatprep.subr.mxu0 0.0
    %1304 = vmatpush1.xpose.msra.mxu0 0.0
    %1305 = vmatprep.subr.mxu0 0.0
    %1306 = vmatpush1.xpose.msra.mxu0 0.0
    %1307 = vmatprep.subr.mxu0 0.0
    %1308 = vmatpush1.xpose.msra.mxu0 0.0
    %1309 = vmatprep.subr.mxu0 0.0
    %1310 = vmatpush1.xpose.msra.mxu0 0.0
    %1311 = vmatprep.subr.mxu0 0.0
    %1312 = vmatpush1.xpose.msra.mxu0 0.0
    %1313 = vmatprep.subr.mxu0 0.0
    %1314 = vmatpush1.xpose.msra.mxu0 0.0
    %1315 = vmatprep.subr.mxu0 0.0
    %1316 = vmatpush1.xpose.msra.mxu0 0.0
    %1317 = vmatprep.subr.mxu0 0.0
    %1318 = vmatpush1.xpose.msra.mxu0 0.0
    %1319 = vmatprep.subr.mxu0 0.0
    %1320 = vmatpush1.xpose.msra.mxu0 0.0
    %1321 = vmatprep.subr.mxu0 0.0
    %1322 = vmatpush1.xpose.msra.mxu0 0.0
    %1323 = vmatprep.subr.mxu0 0.0
    %1324 = vmatpush1.xpose.msra.mxu0 0.0
    %1325 = vmatprep.subr.mxu0 0.0
    %1326 = vmatpush1.xpose.msra.mxu0 0.0
    %1327 = vmatprep.subr.mxu0 0.0
    %1328 = vmatpush1.xpose.msra.mxu0 0.0
    %1329 = vmatprep.subr.mxu0 0.0
    %1330 = vmatpush1.xpose.msra.mxu0 0.0
    %1331 = vmatprep.subr.mxu0 0.0
    %1332 = vmatpush1.xpose.msra.mxu0 0.0
    %1333 = vmatprep.subr.mxu0 0.0
    %1334 = vmatpush1.xpose.msra.mxu0 0.0
    %1335 = vmatprep.subr.mxu0 0.0
    %1336 = vmatpush1.xpose.msra.mxu0 0.0
    %1337 = vmatprep.subr.mxu0 0.0
    %1338 = vmatpush1.xpose.msra.mxu0 0.0
    %1339 = vmatprep.subr.mxu0 0.0
    %1340 = vmatpush1.xpose.msra.mxu0 0.0
    %1341 = vmatprep.subr.mxu0 0.0
    %1342 = vmatpush1.xpose.msra.mxu0 0.0
    %1343 = vmatprep.mubr.f32.mxu0 0.0
    %1344 = vmatmul.mubr.f32.gmra.mrb[0].mxu0 %v1275
    %v1345 = vpop.f32.mrb[0].mxu0
    %v1346 = vadd.f32 0.0, %v1345
    %v1347 = vpop.f32.mrb[0].mxu0
    %1348 = vdwg.mxu0
    %1349 = vrot.lane.b32.xlu0 %v198, 104
    %v1350 = vpop.permute.xlu0 %1349
    %1351 = vrot.lane.b32.xlu0 %v198, 72
    %v1352 = vpop.permute.xlu0 %1351
    %v1353 = vsel %vm283, %v1350, 0
    %v1355 = vsel %vm283, %v1352, 0
    %1357 = vmatprep.subr.mxu0 0.0
    %1358 = vmatpush1.xpose.msra.mxu0 %v1355
    %1359 = vmatprep.subr.mxu0 0.0
    %1360 = vmatpush1.xpose.msra.mxu0 0.0
    %1361 = vmatprep.subr.mxu0 0.0
    %1362 = vmatpush1.xpose.msra.mxu0 0.0
    %1363 = vmatprep.subr.mxu0 0.0
    %1364 = vmatpush1.xpose.msra.mxu0 0.0
    %1365 = vmatprep.subr.mxu0 0.0
    %1366 = vmatpush1.xpose.msra.mxu0 0.0
    %1367 = vmatprep.subr.mxu0 0.0
    %1368 = vmatpush1.xpose.msra.mxu0 0.0
    %1369 = vmatprep.subr.mxu0 0.0
    %1370 = vmatpush1.xpose.msra.mxu0 0.0
    %1371 = vmatprep.subr.mxu0 0.0
    %1372 = vmatpush1.xpose.msra.mxu0 0.0
    %1373 = vmatprep.subr.mxu0 0.0
    %1374 = vmatpush1.xpose.msra.mxu0 0.0
    %1375 = vmatprep.subr.mxu0 0.0
    %1376 = vmatpush1.xpose.msra.mxu0 0.0
    %1377 = vmatprep.subr.mxu0 0.0
    %1378 = vmatpush1.xpose.msra.mxu0 0.0
    %1379 = vmatprep.subr.mxu0 0.0
    %1380 = vmatpush1.xpose.msra.mxu0 0.0
    %1381 = vmatprep.subr.mxu0 0.0
    %1382 = vmatpush1.xpose.msra.mxu0 0.0
    %1383 = vmatprep.subr.mxu0 0.0
    %1384 = vmatpush1.xpose.msra.mxu0 0.0
    %1385 = vmatprep.subr.mxu0 0.0
    %1386 = vmatpush1.xpose.msra.mxu0 0.0
    %1387 = vmatprep.subr.mxu0 0.0
    %1388 = vmatpush1.xpose.msra.mxu0 0.0
    %1389 = vmatprep.subr.mxu0 0.0
    %1390 = vmatpush1.xpose.msra.mxu0 0.0
    %1391 = vmatprep.subr.mxu0 0.0
    %1392 = vmatpush1.xpose.msra.mxu0 0.0
    %1393 = vmatprep.subr.mxu0 0.0
    %1394 = vmatpush1.xpose.msra.mxu0 0.0
    %1395 = vmatprep.subr.mxu0 0.0
    %1396 = vmatpush1.xpose.msra.mxu0 0.0
    %1397 = vmatprep.subr.mxu0 0.0
    %1398 = vmatpush1.xpose.msra.mxu0 0.0
    %1399 = vmatprep.subr.mxu0 0.0
    %1400 = vmatpush1.xpose.msra.mxu0 0.0
    %1401 = vmatprep.subr.mxu0 0.0
    %1402 = vmatpush1.xpose.msra.mxu0 0.0
    %1403 = vmatprep.subr.mxu0 0.0
    %1404 = vmatpush1.xpose.msra.mxu0 0.0
    %1405 = vmatprep.subr.mxu0 0.0
    %1406 = vmatpush1.xpose.msra.mxu0 0.0
    %1407 = vmatprep.subr.mxu0 0.0
    %1408 = vmatpush1.xpose.msra.mxu0 0.0
    %1409 = vmatprep.subr.mxu0 0.0
    %1410 = vmatpush1.xpose.msra.mxu0 0.0
    %1411 = vmatprep.subr.mxu0 0.0
    %1412 = vmatpush1.xpose.msra.mxu0 0.0
    %1413 = vmatprep.subr.mxu0 0.0
    %1414 = vmatpush1.xpose.msra.mxu0 0.0
    %1415 = vmatprep.subr.mxu0 0.0
    %1416 = vmatpush1.xpose.msra.mxu0 0.0
    %1417 = vmatprep.subr.mxu0 0.0
    %1418 = vmatpush1.xpose.msra.mxu0 0.0
    %1419 = vmatprep.subr.mxu0 0.0
    %1420 = vmatpush1.xpose.msra.mxu0 0.0
    %1421 = vmatprep.mubr.f32.mxu0 0.0
    %1422 = vmatmul.mubr.f32.gmra.mrb[0].mxu0 %v1353
    %v1423 = vpop.f32.mrb[0].mxu0
    %v1424 = vadd.f32 0.0, %v1423
    %v1425 = vpop.f32.mrb[0].mxu0
    %1426 = vdwg.mxu0
    %v1427 = vsel %vm283, %v1346, -inf
    %1428 = vmax.xlane.f32.xlu0 %v1427
    %v1429 = vpop.xlane.xlu0 %1428
    %v1430 = vsel %vm283, %v1424, -inf
    %1431 = vmax.xlane.f32.xlu0 %v1430
    %v1432 = vpop.xlane.xlu0 %1431
    %v1433 = vsub.f32 %v1346, %v1429
    %v1434 = vsub.f32 %v1424, %v1432
    %v1435 = vmul.f32 %v1433, 1.442695
    %v1436 = vpow.pop %v1435
    %v1437 = vmul.f32 %v1434, 1.442695
    %v1438 = vpow.pop %v1437
    %v1439 = vsel %vm283, %v1436, 0.0
    %1440 = vadd.xlane.f32.xlu0 %v1439
    %v1441 = vpop.xlane.xlu0 %1440
    %v1442 = vsel %vm283, %v1438, 0.0
    %1443 = vadd.xlane.f32.xlu0 %v1442
    %v1444 = vpop.xlane.xlu0 %1443
    %v1445 = vrcp.pop %v1441
    %v1446 = vrcp.pop %v1444
    %v1447 = vmul.f32 %v1436, %v1445
    %v1448 = vmul.f32 %v1438, %v1446
    %1449 = vrot.lane.b32.xlu0 %v268, 32
    %v1450 = vpop.permute.xlu0 %1449
    %v1453 = vsel %vm283, %v1447, 0
    %1455 = vmatprep.subr.mxu0 0.0
    %1456 = vmatpush1.msra.mxu0 %v1450
    %1457 = vmatprep.subr.mxu0 0.0
    %1458 = vmatpush1.msra.mxu0 0.0
    %1459 = vmatprep.subr.mxu0 0.0
    %1460 = vmatpush1.msra.mxu0 0.0
    %1461 = vmatprep.subr.mxu0 0.0
    %1462 = vmatpush1.msra.mxu0 0.0
    %1463 = vmatprep.subr.mxu0 0.0
    %1464 = vmatpush1.msra.mxu0 0.0
    %1465 = vmatprep.subr.mxu0 0.0
    %1466 = vmatpush1.msra.mxu0 0.0
    %1467 = vmatprep.subr.mxu0 0.0
    %1468 = vmatpush1.msra.mxu0 0.0
    %1469 = vmatprep.subr.mxu0 0.0
    %1470 = vmatpush1.msra.mxu0 0.0
    %1471 = vmatprep.subr.mxu0 0.0
    %1472 = vmatpush1.msra.mxu0 0.0
    %1473 = vmatprep.subr.mxu0 0.0
    %1474 = vmatpush1.msra.mxu0 0.0
    %1475 = vmatprep.subr.mxu0 0.0
    %1476 = vmatpush1.msra.mxu0 0.0
    %1477 = vmatprep.subr.mxu0 0.0
    %1478 = vmatpush1.msra.mxu0 0.0
    %1479 = vmatprep.subr.mxu0 0.0
    %1480 = vmatpush1.msra.mxu0 0.0
    %1481 = vmatprep.subr.mxu0 0.0
    %1482 = vmatpush1.msra.mxu0 0.0
    %1483 = vmatprep.subr.mxu0 0.0
    %1484 = vmatpush1.msra.mxu0 0.0
    %1485 = vmatprep.subr.mxu0 0.0
    %1486 = vmatpush1.msra.mxu0 0.0
    %1487 = vmatprep.subr.mxu0 0.0
    %1488 = vmatpush1.msra.mxu0 0.0
    %1489 = vmatprep.subr.mxu0 0.0
    %1490 = vmatpush1.msra.mxu0 0.0
    %1491 = vmatprep.subr.mxu0 0.0
    %1492 = vmatpush1.msra.mxu0 0.0
    %1493 = vmatprep.subr.mxu0 0.0
    %1494 = vmatpush1.msra.mxu0 0.0
    %1495 = vmatprep.subr.mxu0 0.0
    %1496 = vmatpush1.msra.mxu0 0.0
    %1497 = vmatprep.subr.mxu0 0.0
    %1498 = vmatpush1.msra.mxu0 0.0
    %1499 = vmatprep.subr.mxu0 0.0
    %1500 = vmatpush1.msra.mxu0 0.0
    %1501 = vmatprep.subr.mxu0 0.0
    %1502 = vmatpush1.msra.mxu0 0.0
    %1503 = vmatprep.subr.mxu0 0.0
    %1504 = vmatpush1.msra.mxu0 0.0
    %1505 = vmatprep.subr.mxu0 0.0
    %1506 = vmatpush1.msra.mxu0 0.0
    %1507 = vmatprep.subr.mxu0 0.0
    %1508 = vmatpush1.msra.mxu0 0.0
    %1509 = vmatprep.subr.mxu0 0.0
    %1510 = vmatpush1.msra.mxu0 0.0
    %1511 = vmatprep.subr.mxu0 0.0
    %1512 = vmatpush1.msra.mxu0 0.0
    %1513 = vmatprep.subr.mxu0 0.0
    %1514 = vmatpush1.msra.mxu0 0.0
    %1515 = vmatprep.subr.mxu0 0.0
    %1516 = vmatpush1.msra.mxu0 0.0
    %1517 = vmatprep.subr.mxu0 0.0
    %1518 = vmatpush1.msra.mxu0 0.0
    %1519 = vmatprep.mubr.f32.mxu0 0.0
    %1520 = vmatmul.mubr.f32.gmra.mrb[0].mxu0 %v1453
    %v1521 = vpop.f32.mrb[0].mxu0
    %v1522 = vadd.f32 0.0, %v1521
    %v1523 = vpop.f32.mrb[0].mxu0
    %1524 = vdwg.mxu0
    %1525 = vrot.lane.b32.xlu0 %v273, 32
    %v1526 = vpop.permute.xlu0 %1525
    %v1529 = vsel %vm283, %v1448, 0
    %1531 = vmatprep.subr.mxu0 0.0
    %1532 = vmatpush1.msra.mxu0 %v1526
    %1533 = vmatprep.subr.mxu0 0.0
    %1534 = vmatpush1.msra.mxu0 0.0
    %1535 = vmatprep.subr.mxu0 0.0
    %1536 = vmatpush1.msra.mxu0 0.0
    %1537 = vmatprep.subr.mxu0 0.0
    %1538 = vmatpush1.msra.mxu0 0.0
    %1539 = vmatprep.subr.mxu0 0.0
    %1540 = vmatpush1.msra.mxu0 0.0
    %1541 = vmatprep.subr.mxu0 0.0
    %1542 = vmatpush1.msra.mxu0 0.0
    %1543 = vmatprep.subr.mxu0 0.0
    %1544 = vmatpush1.msra.mxu0 0.0
    %1545 = vmatprep.subr.mxu0 0.0
    %1546 = vmatpush1.msra.mxu0 0.0
    %1547 = vmatprep.subr.mxu0 0.0
    %1548 = vmatpush1.msra.mxu0 0.0
    %1549 = vmatprep.subr.mxu0 0.0
    %1550 = vmatpush1.msra.mxu0 0.0
    %1551 = vmatprep.subr.mxu0 0.0
    %1552 = vmatpush1.msra.mxu0 0.0
    %1553 = vmatprep.subr.mxu0 0.0
    %1554 = vmatpush1.msra.mxu0 0.0
    %1555 = vmatprep.subr.mxu0 0.0
    %1556 = vmatpush1.msra.mxu0 0.0
    %1557 = vmatprep.subr.mxu0 0.0
    %1558 = vmatpush1.msra.mxu0 0.0
    %1559 = vmatprep.subr.mxu0 0.0
    %1560 = vmatpush1.msra.mxu0 0.0
    %1561 = vmatprep.subr.mxu0 0.0
    %1562 = vmatpush1.msra.mxu0 0.0
    %1563 = vmatprep.subr.mxu0 0.0
    %1564 = vmatpush1.msra.mxu0 0.0
    %1565 = vmatprep.subr.mxu0 0.0
    %1566 = vmatpush1.msra.mxu0 0.0
    %1567 = vmatprep.subr.mxu0 0.0
    %1568 = vmatpush1.msra.mxu0 0.0
    %1569 = vmatprep.subr.mxu0 0.0
    %1570 = vmatpush1.msra.mxu0 0.0
    %1571 = vmatprep.subr.mxu0 0.0
    %1572 = vmatpush1.msra.mxu0 0.0
    %1573 = vmatprep.subr.mxu0 0.0
    %1574 = vmatpush1.msra.mxu0 0.0
    %1575 = vmatprep.subr.mxu0 0.0
    %1576 = vmatpush1.msra.mxu0 0.0
    %1577 = vmatprep.subr.mxu0 0.0
    %1578 = vmatpush1.msra.mxu0 0.0
    %1579 = vmatprep.subr.mxu0 0.0
    %1580 = vmatpush1.msra.mxu0 0.0
    %1581 = vmatprep.subr.mxu0 0.0
    %1582 = vmatpush1.msra.mxu0 0.0
    %1583 = vmatprep.subr.mxu0 0.0
    %1584 = vmatpush1.msra.mxu0 0.0
    %1585 = vmatprep.subr.mxu0 0.0
    %1586 = vmatpush1.msra.mxu0 0.0
    %1587 = vmatprep.subr.mxu0 0.0
    %1588 = vmatpush1.msra.mxu0 0.0
    %1589 = vmatprep.subr.mxu0 0.0
    %1590 = vmatpush1.msra.mxu0 0.0
    %1591 = vmatprep.subr.mxu0 0.0
    %1592 = vmatpush1.msra.mxu0 0.0
    %1593 = vmatprep.subr.mxu0 0.0
    %1594 = vmatpush1.msra.mxu0 0.0
    %1595 = vmatprep.mubr.f32.mxu0 0.0
    %1596 = vmatmul.mubr.f32.gmra.mrb[0].mxu0 %v1529
    %v1597 = vpop.f32.mrb[0].mxu0
    %v1598 = vadd.f32 0.0, %v1597
    %v1599 = vpop.f32.mrb[0].mxu0
    %1600 = vdwg.mxu0
    %v1601 = vadd.f32 %v1269, %v1522
    %v1602 = vadd.f32 %v1270, %v1598
    %v1603 = vadd.f32 %v54, %v1601
    %v1604 = vadd.f32 %v55, %v1602
    %v1605 = vsel %vm76, %v1603, 0.0
    %1606 = vadd.xlane.f32.xlu0 %v1605
    %v1607 = vpop.xlane.xlu0 %1606
    %v1608 = vsel %vm76, %v1604, 0.0
    %1609 = vadd.xlane.f32.xlu0 %v1608
    %v1610 = vpop.xlane.xlu0 %1609
    %v1611 = vmul.f32 %v1607, %v83
    %v1612 = vmul.f32 %v1610, %v83
    %v1613 = vsub.f32 %v1603, %v1611
    %v1614 = vsub.f32 %v1604, %v1612
    %v1615 = vmul.f32 %v1613, %v1613
    %v1616 = vmul.f32 %v1614, %v1614
    %v1617 = vsel %vm76, %v1615, 0.0
    %1618 = vadd.xlane.f32.xlu0 %v1617
    %v1619 = vpop.xlane.xlu0 %1618
    %v1620 = vsel %vm76, %v1616, 0.0
    %1621 = vadd.xlane.f32.xlu0 %v1620
    %v1622 = vpop.xlane.xlu0 %1621
    %v1623 = vmul.f32 %v1619, %v83
    %v1624 = vmul.f32 %v1622, %v83
    %v1625 = vadd.f32 %v1623, 1e-05
    %v1626 = vadd.f32 %v1624, 1e-05
    %v1627 = vrsqrt.pop %v1625
    %v1628 = vrsqrt.pop %v1626
    %v1629 = vmul.f32 %v1613, %v1627
    %v1630 = vmul.f32 %v1614, %v1628
    %v1631 = vlaneseq
    %v1632 = vshrl.u32 %v1631, 7
    %v1633 = vsub.s32 0, %v1632
    %v1634 = vrot.slane %v62, %v1633
    %v1635 = vmul.f32 %v1629, %v1634
    %v1636 = vmul.f32 %v1630, %v1634
    %v1637 = vlaneseq
    %v1638 = vshrl.u32 %v1637, 7
    %v1639 = vsub.s32 0, %v1638
    %v1640 = vrot.slane %v63, %v1639
    %v1641 = vadd.f32 %v1635, %v1640
    %v1642 = vadd.f32 %v1636, %v1640
    %v1643 = vlaneseq
    %v1644 = vshrl.u32 %v1643, 7
    %v1645 = vsub.s32 0, %v1644
    %v1646 = vrot.slane %v57, %v1645
    %1651 = vrot.lane.b32.xlu0 %v68, 64
    %v1652 = vpop.permute.xlu0 %1651
    %1653 = vrot.lane.b32.xlu0 %v69, 64
    %v1654 = vpop.permute.xlu0 %1653
    %1655 = vrot.lane.b32.xlu0 %v70, 64
    %v1656 = vpop.permute.xlu0 %1655
    %1657 = vrot.lane.b32.xlu0 %v71, 64
    %v1658 = vpop.permute.xlu0 %1657
    %v1664 = vsel %vm76, %v1641, 0
    %v1667 = vsel %vm76, %v1642, 0
    %1669 = vmatprep.subr.mxu0 0.0
    %1670 = vmatpush1.msra.mxu0 %v1652
    %1671 = vmatprep.subr.mxu0 0.0
    %1672 = vmatpush1.msra.mxu0 %v1654
    %1673 = vmatprep.subr.mxu0 0.0
    %1674 = vmatpush1.msra.mxu0 %v1656
    %1675 = vmatprep.subr.mxu0 0.0
    %1676 = vmatpush1.msra.mxu0 %v1658
    %1677 = vmatprep.subr.mxu0 0.0
    %1678 = vmatpush1.msra.mxu0 0.0
    %1679 = vmatprep.subr.mxu0 0.0
    %1680 = vmatpush1.msra.mxu0 0.0
    %1681 = vmatprep.subr.mxu0 0.0
    %1682 = vmatpush1.msra.mxu0 0.0
    %1683 = vmatprep.subr.mxu0 0.0
    %1684 = vmatpush1.msra.mxu0 0.0
    %1685 = vmatprep.subr.mxu0 0.0
    %1686 = vmatpush1.msra.mxu0 0.0
    %1687 = vmatprep.subr.mxu0 0.0
    %1688 = vmatpush1.msra.mxu0 0.0
    %1689 = vmatprep.subr.mxu0 0.0
    %1690 = vmatpush1.msra.mxu0 0.0
    %1691 = vmatprep.subr.mxu0 0.0
    %1692 = vmatpush1.msra.mxu0 0.0
    %1693 = vmatprep.subr.mxu0 0.0
    %1694 = vmatpush1.msra.mxu0 0.0
    %1695 = vmatprep.subr.mxu0 0.0
    %1696 = vmatpush1.msra.mxu0 0.0
    %1697 = vmatprep.subr.mxu0 0.0
    %1698 = vmatpush1.msra.mxu0 0.0
    %1699 = vmatprep.subr.mxu0 0.0
    %1700 = vmatpush1.msra.mxu0 0.0
    %1701 = vmatprep.subr.mxu0 0.0
    %1702 = vmatpush1.msra.mxu0 0.0
    %1703 = vmatprep.subr.mxu0 0.0
    %1704 = vmatpush1.msra.mxu0 0.0
    %1705 = vmatprep.subr.mxu0 0.0
    %1706 = vmatpush1.msra.mxu0 0.0
    %1707 = vmatprep.subr.mxu0 0.0
    %1708 = vmatpush1.msra.mxu0 0.0
    %1709 = vmatprep.subr.mxu0 0.0
    %1710 = vmatpush1.msra.mxu0 0.0
    %1711 = vmatprep.subr.mxu0 0.0
    %1712 = vmatpush1.msra.mxu0 0.0
    %1713 = vmatprep.subr.mxu0 0.0
    %1714 = vmatpush1.msra.mxu0 0.0
    %1715 = vmatprep.subr.mxu0 0.0
    %1716 = vmatpush1.msra.mxu0 0.0
    %1717 = vmatprep.subr.mxu0 0.0
    %1718 = vmatpush1.msra.mxu0 0.0
    %1719 = vmatprep.subr.mxu0 0.0
    %1720 = vmatpush1.msra.mxu0 0.0
    %1721 = vmatprep.subr.mxu0 0.0
    %1722 = vmatpush1.msra.mxu0 0.0
    %1723 = vmatprep.subr.mxu0 0.0
    %1724 = vmatpush1.msra.mxu0 0.0
    %1725 = vmatprep.subr.mxu0 0.0
    %1726 = vmatpush1.msra.mxu0 0.0
    %1727 = vmatprep.subr.mxu0 0.0
    %1728 = vmatpush1.msra.mxu0 0.0
    %1729 = vmatprep.subr.mxu0 0.0
    %1730 = vmatpush1.msra.mxu0 0.0
    %1731 = vmatprep.subr.mxu0 0.0
    %1732 = vmatpush1.msra.mxu0 0.0
    %1733 = vmatprep.mubr.f32.mxu0 0.0
    %1734 = vmatmul.mubr.f32.gmra.mrb[0].mxu0 %v1664
    %v1735 = vpop.f32.mrb[0].mxu0
    %v1736 = vadd.f32 %v1646, %v1735
    %v1737 = vpop.f32.mrb[0].mxu0
    %1738 = vmatprep.mubr.f32.mxu0 0.0
    %1739 = vmatmul.mubr.f32.gmra.mrb[0].mxu0 %v1667
    %v1740 = vpop.f32.mrb[0].mxu0
    %v1741 = vadd.f32 %v1646, %v1740
    %v1742 = vpop.f32.mrb[0].mxu0
    %1743 = vdwg.mxu0
    %v1744 = vmax.f32 %v1736, 0.0
    %v1745 = vmax.f32 %v1741, 0.0
    %v1746 = vlaneseq
    %v1747 = vshrl.u32 %v1746, 7
    %v1748 = vsub.s32 0, %v1747
    %v1749 = vrot.slane %v59, %v1748
    %vm1750 = vcmask 523264
    %v1752 = vsel %vm1750, %v1744, 0
    %v1755 = vsel %vm1750, %v1745, 0
    %v1758 = vsel %vm1750, %v72, 0
    %v1761 = vsel %vm1750, %v73, 0
    %v1764 = vsel %vm1750, %v74, 0
    %v1767 = vsel %vm1750, %v75, 0
    %1769 = vmatprep.subr.mxu0 0.0
    %1770 = vmatpush1.xpose.msra.mxu0 %v1758
    %1771 = vmatprep.subr.mxu0 0.0
    %1772 = vmatpush1.xpose.msra.mxu0 %v1761
    %1773 = vmatprep.subr.mxu0 0.0
    %1774 = vmatpush1.xpose.msra.mxu0 %v1764
    %1775 = vmatprep.subr.mxu0 0.0
    %1776 = vmatpush1.xpose.msra.mxu0 %v1767
    %1777 = vmatprep.subr.mxu0 0.0
    %1778 = vmatpush1.xpose.msra.mxu0 0.0
    %1779 = vmatprep.subr.mxu0 0.0
    %1780 = vmatpush1.xpose.msra.mxu0 0.0
    %1781 = vmatprep.subr.mxu0 0.0
    %1782 = vmatpush1.xpose.msra.mxu0 0.0
    %1783 = vmatprep.subr.mxu0 0.0
    %1784 = vmatpush1.xpose.msra.mxu0 0.0
    %1785 = vmatprep.subr.mxu0 0.0
    %1786 = vmatpush1.xpose.msra.mxu0 0.0
    %1787 = vmatprep.subr.mxu0 0.0
    %1788 = vmatpush1.xpose.msra.mxu0 0.0
    %1789 = vmatprep.subr.mxu0 0.0
    %1790 = vmatpush1.xpose.msra.mxu0 0.0
    %1791 = vmatprep.subr.mxu0 0.0
    %1792 = vmatpush1.xpose.msra.mxu0 0.0
    %1793 = vmatprep.subr.mxu0 0.0
    %1794 = vmatpush1.xpose.msra.mxu0 0.0
    %1795 = vmatprep.subr.mxu0 0.0
    %1796 = vmatpush1.xpose.msra.mxu0 0.0
    %1797 = vmatprep.subr.mxu0 0.0
    %1798 = vmatpush1.xpose.msra.mxu0 0.0
    %1799 = vmatprep.subr.mxu0 0.0
    %1800 = vmatpush1.xpose.msra.mxu0 0.0
    %1801 = vmatprep.subr.mxu0 0.0
    %1802 = vmatpush1.xpose.msra.mxu0 0.0
    %1803 = vmatprep.subr.mxu0 0.0
    %1804 = vmatpush1.xpose.msra.mxu0 0.0
    %1805 = vmatprep.subr.mxu0 0.0
    %1806 = vmatpush1.xpose.msra.mxu0 0.0
    %1807 = vmatprep.subr.mxu0 0.0
    %1808 = vmatpush1.xpose.msra.mxu0 0.0
    %1809 = vmatprep.subr.mxu0 0.0
    %1810 = vmatpush1.xpose.msra.mxu0 0.0
    %1811 = vmatprep.subr.mxu0 0.0
    %1812 = vmatpush1.xpose.msra.mxu0 0.0
    %1813 = vmatprep.subr.mxu0 0.0
    %1814 = vmatpush1.xpose.msra.mxu0 0.0
    %1815 = vmatprep.subr.mxu0 0.0
    %1816 = vmatpush1.xpose.msra.mxu0 0.0
    %1817 = vmatprep.subr.mxu0 0.0
    %1818 = vmatpush1.xpose.msra.mxu0 0.0
    %1819 = vmatprep.subr.mxu0 0.0
    %1820 = vmatpush1.xpose.msra.mxu0 0.0
    %1821 = vmatprep.subr.mxu0 0.0
    %1822 = vmatpush1.xpose.msra.mxu0 0.0
    %1823 = vmatprep.subr.mxu0 0.0
    %1824 = vmatpush1.xpose.msra.mxu0 0.0
    %1825 = vmatprep.subr.mxu0 0.0
    %1826 = vmatpush1.xpose.msra.mxu0 0.0
    %1827 = vmatprep.subr.mxu0 0.0
    %1828 = vmatpush1.xpose.msra.mxu0 0.0
    %1829 = vmatprep.subr.mxu0 0.0
    %1830 = vmatpush1.xpose.msra.mxu0 0.0
    %1831 = vmatprep.subr.mxu0 0.0
    %1832 = vmatpush1.xpose.msra.mxu0 0.0
    %1833 = vmatprep.mubr.f32.mxu0 0.0
    %1834 = vmatmul.mubr.f32.gmra.mrb[0].mxu0 %v1752
    %v1835 = vpop.f32.mrb[0].mxu0
    %v1836 = vadd.f32 %v1749, %v1835
    %v1837 = vpop.f32.mrb[0].mxu0
    %1838 = vmatprep.mubr.f32.mxu0 0.0
    %1839 = vmatmul.mubr.f32.gmra.mrb[0].mxu0 %v1755
    %v1840 = vpop.f32.mrb[0].mxu0
    %v1841 = vadd.f32 %v1749, %v1840
    %v1842 = vpop.f32.mrb[0].mxu0
    %1843 = vdwg.mxu0
    %v1844 = vadd.f32 %v1603, %v1836
    %v1845 = vadd.f32 %v1604, %v1841
    %1846 = vst.msk [vmem:[#allocation8] sm:$0xff] %vm76, %v1844
    %1847 = vst.msk [vmem:[#allocation8 + $0x8] sm:$0xff] %vm76, %v1845
    // Predicated region
    $region26: #{tpu_custom_call.1} parent=1 // pred_check
      _
    $region27: #{tpu_custom_call.1} parent=1 // pred_check_branch
      %1849 = sbr.rel (0) target = $region29
    $region28: #{tpu_custom_call.1} parent=1 // pred_region
      %s1851 = ssub.s32 256, 256
      %1852 = vsyncadd [#allocation4], %s1851
      %s1853 = sshll.u32 [#allocation8], 4
      %s1854 = int_to_ptr.vmem [resolvable:$true] %s1853
      %1859 = dma.vmem_to_hbm [thread:$0]  %s1854, 256, %s3, [#allocation4], 128, 128, 8
    $region29: #{tpu_custom_call.1} parent=1 // pred_fallthru
      _
    // Predicated region
    $region30: #{tpu_custom_call.1} parent=1 // pred_check
      _
    $region31: #{tpu_custom_call.1} parent=1 // pred_check_branch
      %1861 = sbr.rel (0) target = $region33
    $region32: #{tpu_custom_call.1} parent=1 // pred_region
      %1862 = dma.done [#allocation4], 256
    $region33: #{tpu_custom_call.1} parent=1 // pred_fallthru
      _
    %1863 = vsyncpa [#allocation3], 1
    %1864 = vsyncpa [#allocation6], 1
    %1865 = vsyncpa [#allocation4], 1

</llo_original>
